<compile_context>
chip_gen: v6e
topology: v6e:2x2x1
jax: 0.10.0
libtpu: 0.0.40
codegen_flags: <defaults>
</compile_context>

<pallas_src>
import functools

import jax
import jax.numpy as jnp
from jax.experimental import pallas as pl
from jax.experimental.pallas import tpu as pltpu

FILTER_SIZES = (5, 6, 7)
LANE = 128          # TPU lane width; all matmul N dims are padded to this


def _round_up(x, m):
    return (x + m - 1) // m * m


# ----------------------------- fused kernel -----------------------------

def _make_fused_kernel(TB, E, V_PAD, K, L_max, FLATW, n_g, classes, compute_dtype):
    G = LANE // E                 # token positions packed per 128-lane group
    GV = G * V_PAD

    def kernel(tokd_ref, wblk_ref, wc_ref, bc_ref, lim_ref,
               w1_ref, b1_ref, w2_ref, b2_ref, out_ref, flat_ref):
        f32 = jnp.float32

        # ---- zero the right-hand pad of FLAT (one full-width, lane-aligned store) ----
        flat_ref[:, K:] = jnp.zeros((TB, FLATW - K), f32)

        # ---- vectorized embedding gather on the MXU ----
        # one_hot(tokens) @ block-diag(emb): each group of G = 128/E token positions yields
        # one lane-aligned 128-wide slab of the row-major-flattened embedding
        # FLAT[b, p*E + e]  (this flattening IS the PyTorch `.view(-1,1,E,P)` quirk).
        wblk = wblk_ref[...]
        for g in range(n_g):
            oh = (tokd_ref[:, g * GV:(g + 1) * GV] == 0).astype(f32)      # (TB, G*V_PAD)
            flat_ref[:, g * LANE:(g + 1) * LANE] = jnp.dot(
                oh, wblk, preferred_element_type=f32)

        # ---- fused conv (3 branches packed into 128 lanes) + ReLU + masked max-pool ----
        # out[b, j, c] = sum_m Wrow[m, c] * FLAT[b, j + m] with zero-padded Wrow, so each
        # position j is one shifted (TB, K) @ (K, 128) matmul; invalid (j, branch) pairs
        # are masked with a single precomputed per-column limit (ReLU >= 0, so 0 is a
        # neutral element for the running max).
        wc = wc_ref[...].astype(compute_dtype)
        bc = bc_ref[...]
        lim = lim_ref[...]                                                # (1, 128) int32
        feat = jnp.zeros((TB, LANE), f32)
        for j in range(L_max):
            lhs = flat_ref[:, j:j + K].astype(compute_dtype)
            zj = jnp.dot(lhs, wc, preferred_element_type=f32) + bc
            zj = jnp.maximum(zj, 0.0)
            feat = jnp.maximum(feat, jnp.where(j < lim, zj, 0.0))

        # ---- MLP head: fc1 -> fc2 -> log-softmax (dropout = identity in eval) ----
        h = jnp.dot(feat.astype(compute_dtype), w1_ref[...].astype(compute_dtype),
                    preferred_element_type=f32) + b1_ref[...]
        logits = jnp.dot(h.astype(compute_dtype), w2_ref[...].astype(compute_dtype),
                         preferred_element_type=f32) + b2_ref[...]
        col = jax.lax.broadcasted_iota(jnp.int32, logits.shape, 1)
        x = jnp.where(col < classes, logits, -1e30)                       # mask lane padding
        m = jnp.max(x, axis=1, keepdims=True)
        lse = jnp.log(jnp.sum(jnp.exp(x - m), axis=1, keepdims=True)) + m
        out_ref[...] = x - lse                                            # lane-dense store

    return kernel


def cnn_forward(kparams, tokens, *, emb_size, pad_len, channels, nhidd, classes,
                tile_b=None, compute_dtype=jnp.float32):
    """Fused forward. Returns log-probs of shape (1, B, classes)."""
    B, P = tokens.shape
    assert P == pad_len
    E = emb_size
    assert LANE % E == 0, "toy-size kernel assumes emb_size divides 128"
    G = LANE // E
    assert P % G == 0, "toy-size kernel assumes pad_len is a multiple of 128 // emb_size"
    n_g = P // G
    V_PAD = kparams["wblk"].shape[0] // G
    K = E * P
    L_max = P - min(FILTER_SIZES) + 1
    FLATW = K + _round_up(max(L_max - 1, 1), LANE)

    TB = B if tile_b is None else tile_b
    assert B % TB == 0 and (TB == B or TB % 8 == 0)
    n_tiles = B // TB

    # Lane-dense token encoding for the in-kernel one-hot: tokd[b, p*V_PAD + v] = tok[b,p] - v.
    v_ids = jnp.tile(jnp.arange(V_PAD, dtype=jnp.int32), P)[None, :]
    tokd = jnp.repeat(tokens.astype(jnp.int32), V_PAD, axis=1) - v_ids

    kernel = _make_fused_kernel(TB, E, V_PAD, K, L_max, FLATW, n_g, classes, compute_dtype)

    weight_names = ("wblk", "wc", "bc", "lim", "w1", "b1", "w2", "b2")
    weight_specs = [pl.BlockSpec(kparams[n].shape, lambda i: (0, 0)) for n in weight_names]
    weight_bytes = sum(int(kparams[n].size) * 4 for n in weight_names)

    # VMEM budget: double-buffered inputs/outputs + scratch + headroom.
    block_bytes = TB * P * V_PAD * 4 + weight_bytes + TB * LANE * 4
    vmem_limit = min(2 * block_bytes + TB * FLATW * 4 + (4 << 20), 100 << 20)

    flops = (2 * B * P * V_PAD * LANE          # one-hot gather matmuls
             + 2 * B * K * LANE * L_max        # conv (all 3 branches packed)
             + 2 * 2 * B * LANE * LANE)        # fc1 + fc2
    cost = pl.CostEstimate(
        flops=int(flops),
        transcendentals=int(B * (LANE + 1)),
        bytes_accessed=int(B * P * V_PAD * 4 + B * LANE * 4 + n_tiles * weight_bytes))

    out = pl.pallas_call(
        kernel,
        out_shape=jax.ShapeDtypeStruct((B, LANE), jnp.float32),
        grid=(n_tiles,),
        in_specs=[pl.BlockSpec((TB, P * V_PAD), lambda i: (i, 0))] + weight_specs,
        out_specs=pl.BlockSpec((TB, LANE), lambda i: (i, 0)),
        scratch_shapes=[pltpu.VMEM((TB, FLATW), jnp.float32)],
        compiler_params=pltpu.CompilerParams(
            dimension_semantics=("parallel",), vmem_limit_bytes=int(vmem_limit)),
        cost_estimate=cost,
    )(tokd, *(kparams[n] for n in weight_names))
    return out[:, :classes].reshape(1, B, classes)


# ----------------------------- params -----------------------------

def init_params(key, vocab_size, emb_size, pad_len, channels, nhidd, classes):
    """Logical (unpadded) parameters, mirroring the PyTorch module's init scheme."""
    E, P, C = emb_size, pad_len, channels
    n_br = len(FILTER_SIZES)
    keys = jax.random.split(key, 3 + 2 * n_br)

    emb = jax.random.normal(keys[0], (vocab_size, E), jnp.float32)
    emb = emb.at[0].set(0.0)                                  # padding_idx=0

    conv_w, conv_b = [], []
    for t, f in enumerate(FILTER_SIZES):
        fan_in, fan_out = E * f, C * E * f
        std = (2.0 / (fan_in + fan_out)) ** 0.5               # xavier_normal
        w = std * jax.random.normal(keys[1 + t], (C, E, f), jnp.float32)
        bound = 1.0 / (fan_in ** 0.5)                         # torch Conv2d default bias init
        b = jax.random.uniform(keys[1 + n_br + t], (C,), jnp.float32, -bound, bound)
        conv_w.append(w)
        conv_b.append(b)

    fin = n_br * C
    std1 = (2.0 / (fin + nhidd)) ** 0.5
    w1 = std1 * jax.random.normal(keys[1 + 2 * n_br], (fin, nhidd), jnp.float32)
    std2 = (2.0 / (nhidd + classes)) ** 0.5
    w2 = std2 * jax.random.normal(keys[2 + 2 * n_br], (nhidd, classes), jnp.float32)
    b1 = jnp.zeros((nhidd,), jnp.float32)                     # fc biases zeroed per spec
    b2 = jnp.zeros((classes,), jnp.float32)
    return {"emb": emb, "conv_w": conv_w, "conv_b": conv_b,
            "w1": w1, "b1": b1, "w2": w2, "b2": b2}


def pack_params(params, *, vocab_size, emb_size, pad_len, channels, nhidd, classes):
    """Pad / pack parameters into the lane-dense layouts the kernel consumes."""
    E, P, C = emb_size, pad_len, channels
    n_br = len(FILTER_SIZES)
    assert LANE % E == 0 and P % (LANE // E) == 0
    assert n_br * C <= LANE and nhidd <= LANE and classes <= LANE
    G = LANE // E
    V_PAD = _round_up(max(vocab_size, 1), LANE)

    # Block-diagonal embedding: wblk[s*V_PAD + v, s*E + e] = emb[v, e]  for s < G.
    emb_pad = jnp.zeros((V_PAD, E), jnp.float32).at[:vocab_size].set(params["emb"])
    wblk = jnp.zeros((G * V_PAD, LANE), jnp.float32)
    for s in range(G):
        wblk = wblk.at[s * V_PAD:(s + 1) * V_PAD, s * E:(s + 1) * E].set(emb_pad)

    # Conv: Wrow[i*P + k, t*C + c] = conv_w[t][c, i, k] for k < f_t, zero-padded to 128 lanes.
    w_pack = jnp.zeros((E, P, LANE), jnp.float32)
    bc = jnp.zeros((1, LANE), jnp.float32)
    lim = jnp.zeros((1, LANE), jnp.int32)                     # valid pool positions per column
    for t, f in enumerate(FILTER_SIZES):
        w_pack = w_pack.at[:, :f, t * C:(t + 1) * C].set(
            jnp.transpose(params["conv_w"][t], (1, 2, 0)))
        bc = bc.at[0, t * C:(t + 1) * C].set(params["conv_b"][t])
        lim = lim.at[0, t * C:(t + 1) * C].set(P - f + 1)
    wc = w_pack.reshape(E * P, LANE)

    w1 = jnp.zeros((LANE, LANE), jnp.float32).at[:n_br * C, :nhidd].set(params["w1"])
    b1 = jnp.zeros((1, LANE), jnp.float32).at[0, :nhidd].set(params["b1"])
    w2 = jnp.zeros((LANE, LANE), jnp.float32).at[:nhidd, :classes].set(params["w2"])
    b2 = jnp.zeros((1, LANE), jnp.float32).at[0, :classes].set(params["b2"])
    return {"wblk": wblk, "wc": wc, "bc": bc, "lim": lim,
            "w1": w1, "b1": b1, "w2": w2, "b2": b2}


# ----------------------------- pure-JAX reference -----------------------------

def cnn_forward_reference(params, tokens, *, emb_size, pad_len, channels, nhidd, classes):
    """Reference with identical semantics (including the .view raw-reshape quirk)."""
    B, P = tokens.shape
    E, C = emb_size, channels
    hi = jax.lax.Precision.HIGHEST
    emb = params["emb"][tokens]                               # (B, P, E)
    img = emb.reshape(B, E, P)                                # raw reshape == torch .view quirk
    feats = []
    for t, f in enumerate(FILTER_SIZES):
        L = P - f + 1
        cols = jnp.stack([img[:, :, j:j + f] for j in range(L)], axis=1)   # (B, L, E, f)
        z = jnp.einsum("blik,cik->blc", cols, params["conv_w"][t], precision=hi)
        z = z + params["conv_b"][t][None, None, :]
        feats.append(jnp.max(jax.nn.relu(z), axis=1))         # (B, C)
    feat = jnp.concatenate(feats, axis=1)                     # (B, 3C)
    h = jnp.dot(feat, params["w1"], precision=hi) + params["b1"]
    logits = jnp.dot(h, params["w2"], precision=hi) + params["b2"]
    return jax.nn.log_softmax(logits, axis=1).reshape(1, B, classes)


# ----------------------------- main -----------------------------

if __name__ == "__main__":
    B, pad_len, emb_size = 2, 16, 16
    vocab_size, channels, nhidd, classes = 50, 16, 32, 3

    root = jax.random.PRNGKey(0)
    k_params, k_tokens = jax.random.split(root)
    params = init_params(k_params, vocab_size, emb_size, pad_len, channels, nhidd, classes)
    kparams = pack_params(params, vocab_size=vocab_size, emb_size=emb_size, pad_len=pad_len,
                          channels=channels, nhidd=nhidd, classes=classes)
    tokens = jax.random.randint(k_tokens, (B, pad_len), 0, vocab_size, dtype=jnp.int32)

    fwd = jax.jit(functools.partial(
        cnn_forward, emb_size=emb_size, pad_len=pad_len,
        channels=channels, nhidd=nhidd, classes=classes))
    logp = jax.block_until_ready(fwd(kparams, tokens))

    assert logp.shape == (1, B, classes), logp.shape
    # log-softmax sanity: rows sum to ~1 in prob space
    assert bool(jnp.all(jnp.abs(jnp.sum(jnp.exp(logp), axis=-1) - 1.0) < 1e-4))
    # match the pure-JAX reference
    ref = cnn_forward_reference(params, tokens, emb_size=emb_size, pad_len=pad_len,
                                channels=channels, nhidd=nhidd, classes=classes)
    err = float(jnp.max(jnp.abs(logp - ref)))
    assert err < 2e-3, err
    print("KERNEL_OK")
</pallas_src>

<mosaic_0001>
module attributes {stable_mosaic.version = 11 : i64} {
  func.func @kernel(%arg0: i32, %arg1: memref<2x2048xi32, #tpu.memory_space<vmem>>, %arg2: memref<1024x128xf32, #tpu.memory_space<vmem>>, %arg3: memref<256x128xf32, #tpu.memory_space<vmem>>, %arg4: memref<1x128xf32, #tpu.memory_space<vmem>>, %arg5: memref<1x128xi32, #tpu.memory_space<vmem>>, %arg6: memref<128x128xf32, #tpu.memory_space<vmem>>, %arg7: memref<1x128xf32, #tpu.memory_space<vmem>>, %arg8: memref<128x128xf32, #tpu.memory_space<vmem>>, %arg9: memref<1x128xf32, #tpu.memory_space<vmem>>, %arg10: memref<2x128xf32, #tpu.memory_space<vmem>>, %arg11: memref<2x384xf32, #tpu.memory_space<vmem>>) attributes {dimension_semantics = [#tpu.dimension_semantics<parallel>], iteration_bounds = array<i64: 1>, scalar_prefetch = 0 : i64, scratch_operands = 1 : i64, tpu.core_type = #tpu.core_type<tc>, window_params = [{transform_indices = @transform_0, window_bounds = array<i64: 2, 2048>}, {pipeline_mode = #tpu.pipeline_mode<synchronous>, transform_indices = @transform_1, window_bounds = array<i64: 1024, 128>}, {pipeline_mode = #tpu.pipeline_mode<synchronous>, transform_indices = @transform_2, window_bounds = array<i64: 256, 128>}, {pipeline_mode = #tpu.pipeline_mode<synchronous>, transform_indices = @transform_3, window_bounds = array<i64: 1, 128>}, {pipeline_mode = #tpu.pipeline_mode<synchronous>, transform_indices = @transform_4, window_bounds = array<i64: 1, 128>}, {pipeline_mode = #tpu.pipeline_mode<synchronous>, transform_indices = @transform_5, window_bounds = array<i64: 128, 128>}, {pipeline_mode = #tpu.pipeline_mode<synchronous>, transform_indices = @transform_6, window_bounds = array<i64: 1, 128>}, {pipeline_mode = #tpu.pipeline_mode<synchronous>, transform_indices = @transform_7, window_bounds = array<i64: 128, 128>}, {pipeline_mode = #tpu.pipeline_mode<synchronous>, transform_indices = @transform_8, window_bounds = array<i64: 1, 128>}, {transform_indices = @transform_9, window_bounds = array<i64: 2, 128>}]} {
    %cst = arith.constant 0.000000e+00 : f32
    %0 = vector.broadcast %cst : f32 to vector<2x128xf32>
    %c0 = arith.constant 0 : index
    %c256 = arith.constant 256 : index
    %1 = vector.load %arg11[%c0, %c256] : memref<2x384xf32, #tpu.memory_space<vmem>>, vector<2x128xf32>
    tpu.vector_store %arg11[%c0, %c256], %0 {strides = array<i32>} : memref<2x384xf32, #tpu.memory_space<vmem>>, vector<2x128xf32>,
    %c0_0 = arith.constant 0 : index
    %c0_1 = arith.constant 0 : index
    %2 = vector.load %arg2[%c0_0, %c0_1] : memref<1024x128xf32, #tpu.memory_space<vmem>>, vector<1024x128xf32>
    %c0_2 = arith.constant 0 : index
    %c0_3 = arith.constant 0 : index
    %3 = vector.load %arg1[%c0_2, %c0_3] : memref<2x2048xi32, #tpu.memory_space<vmem>>, vector<2x1024xi32>
    %c0_i32 = arith.constant 0 : i32
    %4 = vector.broadcast %c0_i32 : i32 to vector<2x1024xi32>
    %5 = arith.cmpi eq, %3, %4 : vector<2x1024xi32>
    %6 = arith.extui %5 : vector<2x1024xi1> to vector<2x1024xi32>
    %7 = arith.sitofp %6 : vector<2x1024xi32> to vector<2x1024xf32>
    %cst_4 = arith.constant dense<0.000000e+00> : vector<2x128xf32>
    %8 = tpu.matmul %7, %2, %cst_4 {dimension_numbers = #tpu.dot_dimension_numbers<[1], [0], [0], [1], [0, 0, 1, 1], [], []>} : vector<2x1024xf32>, vector<1024x128xf32>, vector<2x128xf32> -> vector<2x128xf32>
    %c0_5 = arith.constant 0 : index
    %c0_6 = arith.constant 0 : index
    %9 = vector.load %arg11[%c0_5, %c0_6] : memref<2x384xf32, #tpu.memory_space<vmem>>, vector<2x128xf32>
    tpu.vector_store %arg11[%c0_5, %c0_6], %8 {strides = array<i32>} : memref<2x384xf32, #tpu.memory_space<vmem>>, vector<2x128xf32>,
    %c0_7 = arith.constant 0 : index
    %c1024 = arith.constant 1024 : index
    %10 = vector.load %arg1[%c0_7, %c1024] : memref<2x2048xi32, #tpu.memory_space<vmem>>, vector<2x1024xi32>
    %c0_i32_8 = arith.constant 0 : i32
    %11 = vector.broadcast %c0_i32_8 : i32 to vector<2x1024xi32>
    %12 = arith.cmpi eq, %10, %11 : vector<2x1024xi32>
    %13 = arith.extui %12 : vector<2x1024xi1> to vector<2x1024xi32>
    %14 = arith.sitofp %13 : vector<2x1024xi32> to vector<2x1024xf32>
    %cst_9 = arith.constant dense<0.000000e+00> : vector<2x128xf32>
    %15 = tpu.matmul %14, %2, %cst_9 {dimension_numbers = #tpu.dot_dimension_numbers<[1], [0], [0], [1], [0, 0, 1, 1], [], []>} : vector<2x1024xf32>, vector<1024x128xf32>, vector<2x128xf32> -> vector<2x128xf32>
    %c0_10 = arith.constant 0 : index
    %c128 = arith.constant 128 : index
    %16 = vector.load %arg11[%c0_10, %c128] : memref<2x384xf32, #tpu.memory_space<vmem>>, vector<2x128xf32>
    tpu.vector_store %arg11[%c0_10, %c128], %15 {strides = array<i32>} : memref<2x384xf32, #tpu.memory_space<vmem>>, vector<2x128xf32>,
    %c0_11 = arith.constant 0 : index
    %c0_12 = arith.constant 0 : index
    %17 = vector.load %arg3[%c0_11, %c0_12] : memref<256x128xf32, #tpu.memory_space<vmem>>, vector<256x128xf32>
    %c0_13 = arith.constant 0 : index
    %c0_14 = arith.constant 0 : index
    %18 = vector.load %arg4[%c0_13, %c0_14] : memref<1x128xf32, #tpu.memory_space<vmem>>, vector<1x128xf32>
    %c0_15 = arith.constant 0 : index
    %c0_16 = arith.constant 0 : index
    %19 = vector.load %arg5[%c0_15, %c0_16] : memref<1x128xi32, #tpu.memory_space<vmem>>, vector<1x128xi32>
    %cst_17 = arith.constant 0.000000e+00 : f32
    %20 = vector.broadcast %cst_17 : f32 to vector<2x128xf32>
    %c0_18 = arith.constant 0 : index
    %c0_19 = arith.constant 0 : index
    %21 = vector.load %arg11[%c0_18, %c0_19] : memref<2x384xf32, #tpu.memory_space<vmem>>, vector<2x256xf32>
    %cst_20 = arith.constant dense<0.000000e+00> : vector<2x128xf32>
    %22 = tpu.matmul %21, %17, %cst_20 {dimension_numbers = #tpu.dot_dimension_numbers<[1], [0], [0], [1], [0, 0, 1, 1], [], []>} : vector<2x256xf32>, vector<256x128xf32>, vector<2x128xf32> -> vector<2x128xf32>
    %23 = vector.broadcast %18 : vector<1x128xf32> to vector<2x128xf32>
    %24 = arith.addf %22, %23 : vector<2x128xf32>
    %cst_21 = arith.constant 0.000000e+00 : f32
    %25 = vector.broadcast %cst_21 : f32 to vector<2x128xf32>
    %26 = arith.maximumf %24, %25 : vector<2x128xf32>
    %c0_i32_22 = arith.constant 0 : i32
    %27 = vector.broadcast %c0_i32_22 : i32 to vector<1x128xi32>
    %28 = arith.cmpi sgt, %19, %27 : vector<1x128xi32>
    %cst_23 = arith.constant 0.000000e+00 : f32
    %29 = vector.shape_cast %28 : vector<1x128xi1> to vector<1x128xi1>
    %30 = vector.broadcast %29 : vector<1x128xi1> to vector<2x128xi1>
    %31 = vector.broadcast %cst_23 : f32 to vector<2x128xf32>
    %32 = arith.select %30, %26, %31 : vector<2x128xi1>, vector<2x128xf32>
    %33 = arith.maximumf %20, %32 : vector<2x128xf32>
    %c0_24 = arith.constant 0 : index
    %c1 = arith.constant 1 : index
    %34 = vector.load %arg11[%c0_24, %c1] : memref<2x384xf32, #tpu.memory_space<vmem>>, vector<2x256xf32>
    %cst_25 = arith.constant dense<0.000000e+00> : vector<2x128xf32>
    %35 = tpu.matmul %34, %17, %cst_25 {dimension_numbers = #tpu.dot_dimension_numbers<[1], [0], [0], [1], [0, 0, 1, 1], [], []>} : vector<2x256xf32>, vector<256x128xf32>, vector<2x128xf32> -> vector<2x128xf32>
    %36 = vector.broadcast %18 : vector<1x128xf32> to vector<2x128xf32>
    %37 = arith.addf %35, %36 : vector<2x128xf32>
    %cst_26 = arith.constant 0.000000e+00 : f32
    %38 = vector.broadcast %cst_26 : f32 to vector<2x128xf32>
    %39 = arith.maximumf %37, %38 : vector<2x128xf32>
    %c1_i32 = arith.constant 1 : i32
    %40 = vector.broadcast %c1_i32 : i32 to vector<1x128xi32>
    %41 = arith.cmpi sgt, %19, %40 : vector<1x128xi32>
    %cst_27 = arith.constant 0.000000e+00 : f32
    %42 = vector.shape_cast %41 : vector<1x128xi1> to vector<1x128xi1>
    %43 = vector.broadcast %42 : vector<1x128xi1> to vector<2x128xi1>
    %44 = vector.broadcast %cst_27 : f32 to vector<2x128xf32>
    %45 = arith.select %43, %39, %44 : vector<2x128xi1>, vector<2x128xf32>
    %46 = arith.maximumf %33, %45 : vector<2x128xf32>
    %c0_28 = arith.constant 0 : index
    %c2 = arith.constant 2 : index
    %47 = vector.load %arg11[%c0_28, %c2] : memref<2x384xf32, #tpu.memory_space<vmem>>, vector<2x256xf32>
    %cst_29 = arith.constant dense<0.000000e+00> : vector<2x128xf32>
    %48 = tpu.matmul %47, %17, %cst_29 {dimension_numbers = #tpu.dot_dimension_numbers<[1], [0], [0], [1], [0, 0, 1, 1], [], []>} : vector<2x256xf32>, vector<256x128xf32>, vector<2x128xf32> -> vector<2x128xf32>
    %49 = vector.broadcast %18 : vector<1x128xf32> to vector<2x128xf32>
    %50 = arith.addf %48, %49 : vector<2x128xf32>
    %cst_30 = arith.constant 0.000000e+00 : f32
    %51 = vector.broadcast %cst_30 : f32 to vector<2x128xf32>
    %52 = arith.maximumf %50, %51 : vector<2x128xf32>
    %c2_i32 = arith.constant 2 : i32
    %53 = vector.broadcast %c2_i32 : i32 to vector<1x128xi32>
    %54 = arith.cmpi sgt, %19, %53 : vector<1x128xi32>
    %cst_31 = arith.constant 0.000000e+00 : f32
    %55 = vector.shape_cast %54 : vector<1x128xi1> to vector<1x128xi1>
    %56 = vector.broadcast %55 : vector<1x128xi1> to vector<2x128xi1>
    %57 = vector.broadcast %cst_31 : f32 to vector<2x128xf32>
    %58 = arith.select %56, %52, %57 : vector<2x128xi1>, vector<2x128xf32>
    %59 = arith.maximumf %46, %58 : vector<2x128xf32>
    %c0_32 = arith.constant 0 : index
    %c3 = arith.constant 3 : index
    %60 = vector.load %arg11[%c0_32, %c3] : memref<2x384xf32, #tpu.memory_space<vmem>>, vector<2x256xf32>
    %cst_33 = arith.constant dense<0.000000e+00> : vector<2x128xf32>
    %61 = tpu.matmul %60, %17, %cst_33 {dimension_numbers = #tpu.dot_dimension_numbers<[1], [0], [0], [1], [0, 0, 1, 1], [], []>} : vector<2x256xf32>, vector<256x128xf32>, vector<2x128xf32> -> vector<2x128xf32>
    %62 = vector.broadcast %18 : vector<1x128xf32> to vector<2x128xf32>
    %63 = arith.addf %61, %62 : vector<2x128xf32>
    %cst_34 = arith.constant 0.000000e+00 : f32
    %64 = vector.broadcast %cst_34 : f32 to vector<2x128xf32>
    %65 = arith.maximumf %63, %64 : vector<2x128xf32>
    %c3_i32 = arith.constant 3 : i32
    %66 = vector.broadcast %c3_i32 : i32 to vector<1x128xi32>
    %67 = arith.cmpi sgt, %19, %66 : vector<1x128xi32>
    %cst_35 = arith.constant 0.000000e+00 : f32
    %68 = vector.shape_cast %67 : vector<1x128xi1> to vector<1x128xi1>
    %69 = vector.broadcast %68 : vector<1x128xi1> to vector<2x128xi1>
    %70 = vector.broadcast %cst_35 : f32 to vector<2x128xf32>
    %71 = arith.select %69, %65, %70 : vector<2x128xi1>, vector<2x128xf32>
    %72 = arith.maximumf %59, %71 : vector<2x128xf32>
    %c0_36 = arith.constant 0 : index
    %c4 = arith.constant 4 : index
    %73 = vector.load %arg11[%c0_36, %c4] : memref<2x384xf32, #tpu.memory_space<vmem>>, vector<2x256xf32>
    %cst_37 = arith.constant dense<0.000000e+00> : vector<2x128xf32>
    %74 = tpu.matmul %73, %17, %cst_37 {dimension_numbers = #tpu.dot_dimension_numbers<[1], [0], [0], [1], [0, 0, 1, 1], [], []>} : vector<2x256xf32>, vector<256x128xf32>, vector<2x128xf32> -> vector<2x128xf32>
    %75 = vector.broadcast %18 : vector<1x128xf32> to vector<2x128xf32>
    %76 = arith.addf %74, %75 : vector<2x128xf32>
    %cst_38 = arith.constant 0.000000e+00 : f32
    %77 = vector.broadcast %cst_38 : f32 to vector<2x128xf32>
    %78 = arith.maximumf %76, %77 : vector<2x128xf32>
    %c4_i32 = arith.constant 4 : i32
    %79 = vector.broadcast %c4_i32 : i32 to vector<1x128xi32>
    %80 = arith.cmpi sgt, %19, %79 : vector<1x128xi32>
    %cst_39 = arith.constant 0.000000e+00 : f32
    %81 = vector.shape_cast %80 : vector<1x128xi1> to vector<1x128xi1>
    %82 = vector.broadcast %81 : vector<1x128xi1> to vector<2x128xi1>
    %83 = vector.broadcast %cst_39 : f32 to vector<2x128xf32>
    %84 = arith.select %82, %78, %83 : vector<2x128xi1>, vector<2x128xf32>
    %85 = arith.maximumf %72, %84 : vector<2x128xf32>
    %c0_40 = arith.constant 0 : index
    %c5 = arith.constant 5 : index
    %86 = vector.load %arg11[%c0_40, %c5] : memref<2x384xf32, #tpu.memory_space<vmem>>, vector<2x256xf32>
    %cst_41 = arith.constant dense<0.000000e+00> : vector<2x128xf32>
    %87 = tpu.matmul %86, %17, %cst_41 {dimension_numbers = #tpu.dot_dimension_numbers<[1], [0], [0], [1], [0, 0, 1, 1], [], []>} : vector<2x256xf32>, vector<256x128xf32>, vector<2x128xf32> -> vector<2x128xf32>
    %88 = vector.broadcast %18 : vector<1x128xf32> to vector<2x128xf32>
    %89 = arith.addf %87, %88 : vector<2x128xf32>
    %cst_42 = arith.constant 0.000000e+00 : f32
    %90 = vector.broadcast %cst_42 : f32 to vector<2x128xf32>
    %91 = arith.maximumf %89, %90 : vector<2x128xf32>
    %c5_i32 = arith.constant 5 : i32
    %92 = vector.broadcast %c5_i32 : i32 to vector<1x128xi32>
    %93 = arith.cmpi sgt, %19, %92 : vector<1x128xi32>
    %cst_43 = arith.constant 0.000000e+00 : f32
    %94 = vector.shape_cast %93 : vector<1x128xi1> to vector<1x128xi1>
    %95 = vector.broadcast %94 : vector<1x128xi1> to vector<2x128xi1>
    %96 = vector.broadcast %cst_43 : f32 to vector<2x128xf32>
    %97 = arith.select %95, %91, %96 : vector<2x128xi1>, vector<2x128xf32>
    %98 = arith.maximumf %85, %97 : vector<2x128xf32>
    %c0_44 = arith.constant 0 : index
    %c6 = arith.constant 6 : index
    %99 = vector.load %arg11[%c0_44, %c6] : memref<2x384xf32, #tpu.memory_space<vmem>>, vector<2x256xf32>
    %cst_45 = arith.constant dense<0.000000e+00> : vector<2x128xf32>
    %100 = tpu.matmul %99, %17, %cst_45 {dimension_numbers = #tpu.dot_dimension_numbers<[1], [0], [0], [1], [0, 0, 1, 1], [], []>} : vector<2x256xf32>, vector<256x128xf32>, vector<2x128xf32> -> vector<2x128xf32>
    %101 = vector.broadcast %18 : vector<1x128xf32> to vector<2x128xf32>
    %102 = arith.addf %100, %101 : vector<2x128xf32>
    %cst_46 = arith.constant 0.000000e+00 : f32
    %103 = vector.broadcast %cst_46 : f32 to vector<2x128xf32>
    %104 = arith.maximumf %102, %103 : vector<2x128xf32>
    %c6_i32 = arith.constant 6 : i32
    %105 = vector.broadcast %c6_i32 : i32 to vector<1x128xi32>
    %106 = arith.cmpi sgt, %19, %105 : vector<1x128xi32>
    %cst_47 = arith.constant 0.000000e+00 : f32
    %107 = vector.shape_cast %106 : vector<1x128xi1> to vector<1x128xi1>
    %108 = vector.broadcast %107 : vector<1x128xi1> to vector<2x128xi1>
    %109 = vector.broadcast %cst_47 : f32 to vector<2x128xf32>
    %110 = arith.select %108, %104, %109 : vector<2x128xi1>, vector<2x128xf32>
    %111 = arith.maximumf %98, %110 : vector<2x128xf32>
    %c0_48 = arith.constant 0 : index
    %c7 = arith.constant 7 : index
    %112 = vector.load %arg11[%c0_48, %c7] : memref<2x384xf32, #tpu.memory_space<vmem>>, vector<2x256xf32>
    %cst_49 = arith.constant dense<0.000000e+00> : vector<2x128xf32>
    %113 = tpu.matmul %112, %17, %cst_49 {dimension_numbers = #tpu.dot_dimension_numbers<[1], [0], [0], [1], [0, 0, 1, 1], [], []>} : vector<2x256xf32>, vector<256x128xf32>, vector<2x128xf32> -> vector<2x128xf32>
    %114 = vector.broadcast %18 : vector<1x128xf32> to vector<2x128xf32>
    %115 = arith.addf %113, %114 : vector<2x128xf32>
    %cst_50 = arith.constant 0.000000e+00 : f32
    %116 = vector.broadcast %cst_50 : f32 to vector<2x128xf32>
    %117 = arith.maximumf %115, %116 : vector<2x128xf32>
    %c7_i32 = arith.constant 7 : i32
    %118 = vector.broadcast %c7_i32 : i32 to vector<1x128xi32>
    %119 = arith.cmpi sgt, %19, %118 : vector<1x128xi32>
    %cst_51 = arith.constant 0.000000e+00 : f32
    %120 = vector.shape_cast %119 : vector<1x128xi1> to vector<1x128xi1>
    %121 = vector.broadcast %120 : vector<1x128xi1> to vector<2x128xi1>
    %122 = vector.broadcast %cst_51 : f32 to vector<2x128xf32>
    %123 = arith.select %121, %117, %122 : vector<2x128xi1>, vector<2x128xf32>
    %124 = arith.maximumf %111, %123 : vector<2x128xf32>
    %c0_52 = arith.constant 0 : index
    %c8 = arith.constant 8 : index
    %125 = vector.load %arg11[%c0_52, %c8] : memref<2x384xf32, #tpu.memory_space<vmem>>, vector<2x256xf32>
    %cst_53 = arith.constant dense<0.000000e+00> : vector<2x128xf32>
    %126 = tpu.matmul %125, %17, %cst_53 {dimension_numbers = #tpu.dot_dimension_numbers<[1], [0], [0], [1], [0, 0, 1, 1], [], []>} : vector<2x256xf32>, vector<256x128xf32>, vector<2x128xf32> -> vector<2x128xf32>
    %127 = vector.broadcast %18 : vector<1x128xf32> to vector<2x128xf32>
    %128 = arith.addf %126, %127 : vector<2x128xf32>
    %cst_54 = arith.constant 0.000000e+00 : f32
    %129 = vector.broadcast %cst_54 : f32 to vector<2x128xf32>
    %130 = arith.maximumf %128, %129 : vector<2x128xf32>
    %c8_i32 = arith.constant 8 : i32
    %131 = vector.broadcast %c8_i32 : i32 to vector<1x128xi32>
    %132 = arith.cmpi sgt, %19, %131 : vector<1x128xi32>
    %cst_55 = arith.constant 0.000000e+00 : f32
    %133 = vector.shape_cast %132 : vector<1x128xi1> to vector<1x128xi1>
    %134 = vector.broadcast %133 : vector<1x128xi1> to vector<2x128xi1>
    %135 = vector.broadcast %cst_55 : f32 to vector<2x128xf32>
    %136 = arith.select %134, %130, %135 : vector<2x128xi1>, vector<2x128xf32>
    %137 = arith.maximumf %124, %136 : vector<2x128xf32>
    %c0_56 = arith.constant 0 : index
    %c9 = arith.constant 9 : index
    %138 = vector.load %arg11[%c0_56, %c9] : memref<2x384xf32, #tpu.memory_space<vmem>>, vector<2x256xf32>
    %cst_57 = arith.constant dense<0.000000e+00> : vector<2x128xf32>
    %139 = tpu.matmul %138, %17, %cst_57 {dimension_numbers = #tpu.dot_dimension_numbers<[1], [0], [0], [1], [0, 0, 1, 1], [], []>} : vector<2x256xf32>, vector<256x128xf32>, vector<2x128xf32> -> vector<2x128xf32>
    %140 = vector.broadcast %18 : vector<1x128xf32> to vector<2x128xf32>
    %141 = arith.addf %139, %140 : vector<2x128xf32>
    %cst_58 = arith.constant 0.000000e+00 : f32
    %142 = vector.broadcast %cst_58 : f32 to vector<2x128xf32>
    %143 = arith.maximumf %141, %142 : vector<2x128xf32>
    %c9_i32 = arith.constant 9 : i32
    %144 = vector.broadcast %c9_i32 : i32 to vector<1x128xi32>
    %145 = arith.cmpi sgt, %19, %144 : vector<1x128xi32>
    %cst_59 = arith.constant 0.000000e+00 : f32
    %146 = vector.shape_cast %145 : vector<1x128xi1> to vector<1x128xi1>
    %147 = vector.broadcast %146 : vector<1x128xi1> to vector<2x128xi1>
    %148 = vector.broadcast %cst_59 : f32 to vector<2x128xf32>
    %149 = arith.select %147, %143, %148 : vector<2x128xi1>, vector<2x128xf32>
    %150 = arith.maximumf %137, %149 : vector<2x128xf32>
    %c0_60 = arith.constant 0 : index
    %c10 = arith.constant 10 : index
    %151 = vector.load %arg11[%c0_60, %c10] : memref<2x384xf32, #tpu.memory_space<vmem>>, vector<2x256xf32>
    %cst_61 = arith.constant dense<0.000000e+00> : vector<2x128xf32>
    %152 = tpu.matmul %151, %17, %cst_61 {dimension_numbers = #tpu.dot_dimension_numbers<[1], [0], [0], [1], [0, 0, 1, 1], [], []>} : vector<2x256xf32>, vector<256x128xf32>, vector<2x128xf32> -> vector<2x128xf32>
    %153 = vector.broadcast %18 : vector<1x128xf32> to vector<2x128xf32>
    %154 = arith.addf %152, %153 : vector<2x128xf32>
    %cst_62 = arith.constant 0.000000e+00 : f32
    %155 = vector.broadcast %cst_62 : f32 to vector<2x128xf32>
    %156 = arith.maximumf %154, %155 : vector<2x128xf32>
    %c10_i32 = arith.constant 10 : i32
    %157 = vector.broadcast %c10_i32 : i32 to vector<1x128xi32>
    %158 = arith.cmpi sgt, %19, %157 : vector<1x128xi32>
    %cst_63 = arith.constant 0.000000e+00 : f32
    %159 = vector.shape_cast %158 : vector<1x128xi1> to vector<1x128xi1>
    %160 = vector.broadcast %159 : vector<1x128xi1> to vector<2x128xi1>
    %161 = vector.broadcast %cst_63 : f32 to vector<2x128xf32>
    %162 = arith.select %160, %156, %161 : vector<2x128xi1>, vector<2x128xf32>
    %163 = arith.maximumf %150, %162 : vector<2x128xf32>
    %c0_64 = arith.constant 0 : index
    %c11 = arith.constant 11 : index
    %164 = vector.load %arg11[%c0_64, %c11] : memref<2x384xf32, #tpu.memory_space<vmem>>, vector<2x256xf32>
    %cst_65 = arith.constant dense<0.000000e+00> : vector<2x128xf32>
    %165 = tpu.matmul %164, %17, %cst_65 {dimension_numbers = #tpu.dot_dimension_numbers<[1], [0], [0], [1], [0, 0, 1, 1], [], []>} : vector<2x256xf32>, vector<256x128xf32>, vector<2x128xf32> -> vector<2x128xf32>
    %166 = vector.broadcast %18 : vector<1x128xf32> to vector<2x128xf32>
    %167 = arith.addf %165, %166 : vector<2x128xf32>
    %cst_66 = arith.constant 0.000000e+00 : f32
    %168 = vector.broadcast %cst_66 : f32 to vector<2x128xf32>
    %169 = arith.maximumf %167, %168 : vector<2x128xf32>
    %c11_i32 = arith.constant 11 : i32
    %170 = vector.broadcast %c11_i32 : i32 to vector<1x128xi32>
    %171 = arith.cmpi sgt, %19, %170 : vector<1x128xi32>
    %cst_67 = arith.constant 0.000000e+00 : f32
    %172 = vector.shape_cast %171 : vector<1x128xi1> to vector<1x128xi1>
    %173 = vector.broadcast %172 : vector<1x128xi1> to vector<2x128xi1>
    %174 = vector.broadcast %cst_67 : f32 to vector<2x128xf32>
    %175 = arith.select %173, %169, %174 : vector<2x128xi1>, vector<2x128xf32>
    %176 = arith.maximumf %163, %175 : vector<2x128xf32>
    %c0_68 = arith.constant 0 : index
    %c0_69 = arith.constant 0 : index
    %177 = vector.load %arg6[%c0_68, %c0_69] : memref<128x128xf32, #tpu.memory_space<vmem>>, vector<128x128xf32>
    %cst_70 = arith.constant dense<0.000000e+00> : vector<2x128xf32>
    %178 = tpu.matmul %176, %177, %cst_70 {dimension_numbers = #tpu.dot_dimension_numbers<[1], [0], [0], [1], [0, 0, 1, 1], [], []>} : vector<2x128xf32>, vector<128x128xf32>, vector<2x128xf32> -> vector<2x128xf32>
    %c0_71 = arith.constant 0 : index
    %c0_72 = arith.constant 0 : index
    %179 = vector.load %arg7[%c0_71, %c0_72] : memref<1x128xf32, #tpu.memory_space<vmem>>, vector<1x128xf32>
    %180 = vector.broadcast %179 : vector<1x128xf32> to vector<2x128xf32>
    %181 = arith.addf %178, %180 : vector<2x128xf32>
    %c0_73 = arith.constant 0 : index
    %c0_74 = arith.constant 0 : index
    %182 = vector.load %arg8[%c0_73, %c0_74] : memref<128x128xf32, #tpu.memory_space<vmem>>, vector<128x128xf32>
    %cst_75 = arith.constant dense<0.000000e+00> : vector<2x128xf32>
    %183 = tpu.matmul %181, %182, %cst_75 {dimension_numbers = #tpu.dot_dimension_numbers<[1], [0], [0], [1], [0, 0, 1, 1], [], []>} : vector<2x128xf32>, vector<128x128xf32>, vector<2x128xf32> -> vector<2x128xf32>
    %c0_76 = arith.constant 0 : index
    %c0_77 = arith.constant 0 : index
    %184 = vector.load %arg9[%c0_76, %c0_77] : memref<1x128xf32, #tpu.memory_space<vmem>>, vector<1x128xf32>
    %185 = vector.broadcast %184 : vector<1x128xf32> to vector<2x128xf32>
    %186 = arith.addf %183, %185 : vector<2x128xf32>
    %187 = tpu.iota {dimensions = array<i32: 1>} : vector<2x128xi32>
    %c3_i32_78 = arith.constant 3 : i32
    %188 = vector.broadcast %c3_i32_78 : i32 to vector<2x128xi32>
    %189 = arith.cmpi slt, %187, %188 : vector<2x128xi32>
    %cst_79 = arith.constant -1.000000e+30 : f32
    %190 = vector.broadcast %cst_79 : f32 to vector<2x128xf32>
    %191 = arith.select %189, %186, %190 : vector<2x128xi1>, vector<2x128xf32>
    %cst_80 = arith.constant dense<0xFF800000> : vector<2xf32>
    %192 = vector.multi_reduction <maximumf>, %191, %cst_80 [1] : vector<2x128xf32> to vector<2xf32>
    %193 = vector.shape_cast %192 : vector<2xf32> to vector<2x1xf32>
    %194 = vector.broadcast %193 : vector<2x1xf32> to vector<2x128xf32>
    %195 = arith.subf %191, %194 : vector<2x128xf32>
    %196 = math.exp %195 : vector<2x128xf32>
    %cst_81 = arith.constant dense<0.000000e+00> : vector<2xf32>
    %197 = vector.multi_reduction <add>, %196, %cst_81 [1] : vector<2x128xf32> to vector<2xf32>
    %198 = vector.shape_cast %197 : vector<2xf32> to vector<2x1xf32>
    %199 = math.log %198 : vector<2x1xf32>
    %200 = arith.addf %199, %193 : vector<2x1xf32>
    %201 = vector.broadcast %200 : vector<2x1xf32> to vector<2x128xf32>
    %202 = arith.subf %191, %201 : vector<2x128xf32>
    %c0_82 = arith.constant 0 : index
    %c0_83 = arith.constant 0 : index
    %203 = vector.load %arg10[%c0_82, %c0_83] : memref<2x128xf32, #tpu.memory_space<vmem>>, vector<2x128xf32>
    tpu.vector_store %arg10[%c0_82, %c0_83], %202 {strides = array<i32>} : memref<2x128xf32, #tpu.memory_space<vmem>>, vector<2x128xf32>,
    return
  }
  func.func @transform_0(%arg0: i32) -> (i32, i32) {
    %c0_i32 = arith.constant 0 : i32
    %c0_i32_0 = arith.constant 0 : i32
    return %arg0, %c0_i32 : i32, i32
  }
  func.func @transform_1(%arg0: i32) -> (i32, i32) {
    %c0_i32 = arith.constant 0 : i32
    %c0_i32_0 = arith.constant 0 : i32
    %c0_i32_1 = arith.constant 0 : i32
    return %c0_i32, %c0_i32_0 : i32, i32
  }
  func.func @transform_2(%arg0: i32) -> (i32, i32) {
    %c0_i32 = arith.constant 0 : i32
    %c0_i32_0 = arith.constant 0 : i32
    %c0_i32_1 = arith.constant 0 : i32
    return %c0_i32, %c0_i32_0 : i32, i32
  }
  func.func @transform_3(%arg0: i32) -> (i32, i32) {
    %c0_i32 = arith.constant 0 : i32
    %c0_i32_0 = arith.constant 0 : i32
    %c0_i32_1 = arith.constant 0 : i32
    return %c0_i32, %c0_i32_0 : i32, i32
  }
  func.func @transform_4(%arg0: i32) -> (i32, i32) {
    %c0_i32 = arith.constant 0 : i32
    %c0_i32_0 = arith.constant 0 : i32
    %c0_i32_1 = arith.constant 0 : i32
    return %c0_i32, %c0_i32_0 : i32, i32
  }
  func.func @transform_5(%arg0: i32) -> (i32, i32) {
    %c0_i32 = arith.constant 0 : i32
    %c0_i32_0 = arith.constant 0 : i32
    %c0_i32_1 = arith.constant 0 : i32
    return %c0_i32, %c0_i32_0 : i32, i32
  }
  func.func @transform_6(%arg0: i32) -> (i32, i32) {
    %c0_i32 = arith.constant 0 : i32
    %c0_i32_0 = arith.constant 0 : i32
    %c0_i32_1 = arith.constant 0 : i32
    return %c0_i32, %c0_i32_0 : i32, i32
  }
  func.func @transform_7(%arg0: i32) -> (i32, i32) {
    %c0_i32 = arith.constant 0 : i32
    %c0_i32_0 = arith.constant 0 : i32
    %c0_i32_1 = arith.constant 0 : i32
    return %c0_i32, %c0_i32_0 : i32, i32
  }
  func.func @transform_8(%arg0: i32) -> (i32, i32) {
    %c0_i32 = arith.constant 0 : i32
    %c0_i32_0 = arith.constant 0 : i32
    %c0_i32_1 = arith.constant 0 : i32
    return %c0_i32, %c0_i32_0 : i32, i32
  }
  func.func @transform_9(%arg0: i32) -> (i32, i32) {
    %c0_i32 = arith.constant 0 : i32
    %c0_i32_0 = arith.constant 0 : i32
    return %arg0, %c0_i32 : i32, i32
  }
}

</mosaic_0001>

<llo_original>
// kernel: cnn_forward.1
$region0: #{cnn_forward.1}
  #allocation0 [shape = 'u32[]', space=smem, size = 0x4, offset = 0x4, fixed_abs, tag = 'smem constant byte address 0x4 - core index']
  #allocation1 [shape = 'u32[144,128]{1,0:T(1,128)}', space=vmem, size = 0x12000, scoped, tag = 'internal scratch']
  #allocation2 [shape = 'f32[2,384]{1,0:T(2,128)}', space=vmem, size = 0xc00, scoped, tag = 'scratch operand']
  %s0 = inlined_call_operand.vmem [shape: s32[2,2048], index: 0, kind: input, shape index: {}]
  %s1 = inlined_call_operand.hbm [shape: f32[1024,128], index: 1, kind: input, shape index: {}]
  %s2 = inlined_call_operand.hbm [shape: f32[256,128], index: 2, kind: input, shape index: {}]
  %s3 = inlined_call_operand.vmem [shape: f32[1,128], index: 3, kind: input, shape index: {}]
  %s4 = inlined_call_operand.vmem [shape: s32[1,128], index: 4, kind: input, shape index: {}]
  %s5 = inlined_call_operand.vmem [shape: f32[128,128], index: 5, kind: input, shape index: {}]
  %s6 = inlined_call_operand.vmem [shape: f32[1,128], index: 6, kind: input, shape index: {}]
  %s7 = inlined_call_operand.hbm [shape: f32[128,128], index: 7, kind: input, shape index: {}]
  %s8 = inlined_call_operand.vmem [shape: f32[1,128], index: 8, kind: input, shape index: {}]
  %s9 = inlined_call_operand.vmem [shape: f32[2,128], index: 9, kind: output, shape index: {}]
  %s10 = sld [smem:[#allocation0]]
  $region58: #{cnn_forward.1} parent=0
    _
  %s12 = ssub.s32 1, %s10
  %s13 = scalar_select 0, %s12, %s10
  $region1: #{cnn_forward.1} parent=0
    #allocation3 [shape = 'u8[524288]{0}', space=vmem, size = 0x80000, scoped, tag = 'input window, operand 1, single buffered']
    #allocation4 [shape = 's32[1]{0}', space=sflag, size = 0x4, scoped, tag = 'scoped memory for cnn_forward.1']
    #allocation5 [shape = 'u8[131072]{0}', space=vmem, size = 0x20000, scoped, tag = 'input window, operand 2, single buffered']
    #allocation6 [shape = 's32[1]{0}', space=sflag, size = 0x4, scoped, tag = 'scoped memory for cnn_forward.1']
    #allocation7 [shape = 'u8[65536]{0}', space=vmem, size = 0x10000, scoped, tag = 'input window, operand 7, single buffered']
    %14 = vsyncpa [#allocation4], 0
    %15 = vsyncpa [#allocation6], 0
    // Predicated region
    $region2: #{cnn_forward.1} parent=1 // pred_check
      _
    $region3: #{cnn_forward.1} parent=1 // pred_check_branch
      %17 = sbr.rel (0) target = $region5
    $region4: #{cnn_forward.1} parent=1 // pred_region
      _
    $region5: #{cnn_forward.1} parent=1 // pred_fallthru
      _
    // Predicated region
    $region6: #{cnn_forward.1} parent=1 // pred_check
      _
    $region7: #{cnn_forward.1} parent=1 // pred_check_branch
      %19 = sbr.rel (0) target = $region9
    $region8: #{cnn_forward.1} parent=1 // pred_region
      %s21 = ssub.s32 16384, 16384
      %22 = vsyncadd [#allocation4], %s21
      %s23 = sshll.u32 [#allocation3], 4
      %s24 = int_to_ptr.vmem [resolvable:$true] %s23
      %29 = dma.hbm_to_vmem [thread:$0]  %s1, 16384, %s24, [#allocation4], 128, 128, 8
    $region9: #{cnn_forward.1} parent=1 // pred_fallthru
      _
    // Predicated region
    $region10: #{cnn_forward.1} parent=1 // pred_check
      _
    $region11: #{cnn_forward.1} parent=1 // pred_check_branch
      %31 = sbr.rel (0) target = $region13
    $region12: #{cnn_forward.1} parent=1 // pred_region
      %s33 = ssub.s32 4096, 4096
      %34 = vsyncadd [#allocation6], %s33
      %s35 = sshll.u32 [#allocation5], 4
      %s36 = int_to_ptr.vmem [resolvable:$true] %s35
      %41 = dma.hbm_to_vmem [thread:$0]  %s2, 4096, %s36, [#allocation6], 128, 128, 8
    $region13: #{cnn_forward.1} parent=1 // pred_fallthru
      _
    // Predicated region
    $region14: #{cnn_forward.1} parent=1 // pred_check
      _
    $region15: #{cnn_forward.1} parent=1 // pred_check_branch
      %43 = sbr.rel (0) target = $region17
    $region16: #{cnn_forward.1} parent=1 // pred_region
      _
    $region17: #{cnn_forward.1} parent=1 // pred_fallthru
      _
    // Predicated region
    $region18: #{cnn_forward.1} parent=1 // pred_check
      _
    $region19: #{cnn_forward.1} parent=1 // pred_check_branch
      %45 = sbr.rel (0) target = $region21
    $region20: #{cnn_forward.1} parent=1 // pred_region
      _
    $region21: #{cnn_forward.1} parent=1 // pred_fallthru
      _
    // Predicated region
    $region22: #{cnn_forward.1} parent=1 // pred_check
      _
    $region23: #{cnn_forward.1} parent=1 // pred_check_branch
      %47 = sbr.rel (0) target = $region25
    $region24: #{cnn_forward.1} parent=1 // pred_region
      _
    $region25: #{cnn_forward.1} parent=1 // pred_fallthru
      _
    // Predicated region
    $region26: #{cnn_forward.1} parent=1 // pred_check
      _
    $region27: #{cnn_forward.1} parent=1 // pred_check_branch
      %49 = sbr.rel (0) target = $region29
    $region28: #{cnn_forward.1} parent=1 // pred_region
      _
    $region29: #{cnn_forward.1} parent=1 // pred_fallthru
      _
    // Predicated region
    $region30: #{cnn_forward.1} parent=1 // pred_check
      _
    $region31: #{cnn_forward.1} parent=1 // pred_check_branch
      %51 = sbr.rel (0) target = $region33
    $region32: #{cnn_forward.1} parent=1 // pred_region
      %s53 = ssub.s32 2048, 2048
      %54 = vsyncadd [#allocation6], %s53
      %s55 = sshll.u32 [#allocation7], 4
      %s56 = int_to_ptr.vmem [resolvable:$true] %s55
      %61 = dma.hbm_to_vmem [thread:$0]  %s7, 2048, %s56, [#allocation6], 128, 128, 8
    $region33: #{cnn_forward.1} parent=1 // pred_fallthru
      _
    // Predicated region
    $region34: #{cnn_forward.1} parent=1 // pred_check
      _
    $region35: #{cnn_forward.1} parent=1 // pred_check_branch
      %63 = sbr.rel (0) target = $region37
    $region36: #{cnn_forward.1} parent=1 // pred_region
      _
    $region37: #{cnn_forward.1} parent=1 // pred_fallthru
      _
    // Predicated region
    $region38: #{cnn_forward.1} parent=1 // pred_check
      _
    $region39: #{cnn_forward.1} parent=1 // pred_check_branch
      %65 = sbr.rel (0) target = $region41
    $region40: #{cnn_forward.1} parent=1 // pred_region
      %66 = dma.done [#allocation4], 16384
    $region41: #{cnn_forward.1} parent=1 // pred_fallthru
      _
    // Predicated region
    $region42: #{cnn_forward.1} parent=1 // pred_check
      _
    $region43: #{cnn_forward.1} parent=1 // pred_check_branch
      %68 = sbr.rel (0) target = $region45
    $region44: #{cnn_forward.1} parent=1 // pred_region
      %69 = dma.done [#allocation6], 4096
    $region45: #{cnn_forward.1} parent=1 // pred_fallthru
      _
    // Predicated region
    $region46: #{cnn_forward.1} parent=1 // pred_check
      _
    $region47: #{cnn_forward.1} parent=1 // pred_check_branch
      %71 = sbr.rel (0) target = $region49
    $region48: #{cnn_forward.1} parent=1 // pred_region
      %72 = dma.done [#allocation6], 2048
    $region49: #{cnn_forward.1} parent=1 // pred_fallthru
      _
    %73 = vst [vmem:[#allocation2 + $0x4] sm:$0x3] 0.0
    %v74 = vld [vmem:[#allocation3] sm:$0xff]
    %v75 = vld [vmem:[#allocation3 + $0x8] sm:$0xff]
    %v76 = vld [vmem:[#allocation3 + $0x10] sm:$0xff]
    %v77 = vld [vmem:[#allocation3 + $0x18] sm:$0xff]
    %v78 = vld [vmem:[#allocation3 + $0x20] sm:$0xff]
    %v79 = vld [vmem:[#allocation3 + $0x28] sm:$0xff]
    %v80 = vld [vmem:[#allocation3 + $0x30] sm:$0xff]
    %v81 = vld [vmem:[#allocation3 + $0x38] sm:$0xff]
    %v82 = vld [vmem:[#allocation3 + $0x40] sm:$0xff]
    %v83 = vld [vmem:[#allocation3 + $0x48] sm:$0xff]
    %v84 = vld [vmem:[#allocation3 + $0x50] sm:$0xff]
    %v85 = vld [vmem:[#allocation3 + $0x58] sm:$0xff]
    %v86 = vld [vmem:[#allocation3 + $0x60] sm:$0xff]
    %v87 = vld [vmem:[#allocation3 + $0x68] sm:$0xff]
    %v88 = vld [vmem:[#allocation3 + $0x70] sm:$0xff]
    %v89 = vld [vmem:[#allocation3 + $0x78] sm:$0xff]
    %v90 = vld [vmem:[#allocation3 + $0x80] sm:$0xff]
    %v91 = vld [vmem:[#allocation3 + $0x88] sm:$0xff]
    %v92 = vld [vmem:[#allocation3 + $0x90] sm:$0xff]
    %v93 = vld [vmem:[#allocation3 + $0x98] sm:$0xff]
    %v94 = vld [vmem:[#allocation3 + $0xa0] sm:$0xff]
    %v95 = vld [vmem:[#allocation3 + $0xa8] sm:$0xff]
    %v96 = vld [vmem:[#allocation3 + $0xb0] sm:$0xff]
    %v97 = vld [vmem:[#allocation3 + $0xb8] sm:$0xff]
    %v98 = vld [vmem:[#allocation3 + $0xc0] sm:$0xff]
    %v99 = vld [vmem:[#allocation3 + $0xc8] sm:$0xff]
    %v100 = vld [vmem:[#allocation3 + $0xd0] sm:$0xff]
    %v101 = vld [vmem:[#allocation3 + $0xd8] sm:$0xff]
    %v102 = vld [vmem:[#allocation3 + $0xe0] sm:$0xff]
    %v103 = vld [vmem:[#allocation3 + $0xe8] sm:$0xff]
    %v104 = vld [vmem:[#allocation3 + $0xf0] sm:$0xff]
    %v105 = vld [vmem:[#allocation3 + $0xf8] sm:$0xff]
    %v106 = vld [vmem:[#allocation3 + $0x100] sm:$0xff]
    %v107 = vld [vmem:[#allocation3 + $0x108] sm:$0xff]
    %v108 = vld [vmem:[#allocation3 + $0x110] sm:$0xff]
    %v109 = vld [vmem:[#allocation3 + $0x118] sm:$0xff]
    %v110 = vld [vmem:[#allocation3 + $0x120] sm:$0xff]
    %v111 = vld [vmem:[#allocation3 + $0x128] sm:$0xff]
    %v112 = vld [vmem:[#allocation3 + $0x130] sm:$0xff]
    %v113 = vld [vmem:[#allocation3 + $0x138] sm:$0xff]
    %v114 = vld [vmem:[#allocation3 + $0x140] sm:$0xff]
    %v115 = vld [vmem:[#allocation3 + $0x148] sm:$0xff]
    %v116 = vld [vmem:[#allocation3 + $0x150] sm:$0xff]
    %v117 = vld [vmem:[#allocation3 + $0x158] sm:$0xff]
    %v118 = vld [vmem:[#allocation3 + $0x160] sm:$0xff]
    %v119 = vld [vmem:[#allocation3 + $0x168] sm:$0xff]
    %v120 = vld [vmem:[#allocation3 + $0x170] sm:$0xff]
    %v121 = vld [vmem:[#allocation3 + $0x178] sm:$0xff]
    %v122 = vld [vmem:[#allocation3 + $0x180] sm:$0xff]
    %v123 = vld [vmem:[#allocation3 + $0x188] sm:$0xff]
    %v124 = vld [vmem:[#allocation3 + $0x190] sm:$0xff]
    %v125 = vld [vmem:[#allocation3 + $0x198] sm:$0xff]
    %v126 = vld [vmem:[#allocation3 + $0x1a0] sm:$0xff]
    %v127 = vld [vmem:[#allocation3 + $0x1a8] sm:$0xff]
    %v128 = vld [vmem:[#allocation3 + $0x1b0] sm:$0xff]
    %v129 = vld [vmem:[#allocation3 + $0x1b8] sm:$0xff]
    %v130 = vld [vmem:[#allocation3 + $0x1c0] sm:$0xff]
    %v131 = vld [vmem:[#allocation3 + $0x1c8] sm:$0xff]
    %v132 = vld [vmem:[#allocation3 + $0x1d0] sm:$0xff]
    %v133 = vld [vmem:[#allocation3 + $0x1d8] sm:$0xff]
    %v134 = vld [vmem:[#allocation3 + $0x1e0] sm:$0xff]
    %v135 = vld [vmem:[#allocation3 + $0x1e8] sm:$0xff]
    %v136 = vld [vmem:[#allocation3 + $0x1f0] sm:$0xff]
    %v137 = vld [vmem:[#allocation3 + $0x1f8] sm:$0xff]
    %v138 = vld [vmem:[#allocation3 + $0x200] sm:$0xff]
    %v139 = vld [vmem:[#allocation3 + $0x208] sm:$0xff]
    %v140 = vld [vmem:[#allocation3 + $0x210] sm:$0xff]
    %v141 = vld [vmem:[#allocation3 + $0x218] sm:$0xff]
    %v142 = vld [vmem:[#allocation3 + $0x220] sm:$0xff]
    %v143 = vld [vmem:[#allocation3 + $0x228] sm:$0xff]
    %v144 = vld [vmem:[#allocation3 + $0x230] sm:$0xff]
    %v145 = vld [vmem:[#allocation3 + $0x238] sm:$0xff]
    %v146 = vld [vmem:[#allocation3 + $0x240] sm:$0xff]
    %v147 = vld [vmem:[#allocation3 + $0x248] sm:$0xff]
    %v148 = vld [vmem:[#allocation3 + $0x250] sm:$0xff]
    %v149 = vld [vmem:[#allocation3 + $0x258] sm:$0xff]
    %v150 = vld [vmem:[#allocation3 + $0x260] sm:$0xff]
    %v151 = vld [vmem:[#allocation3 + $0x268] sm:$0xff]
    %v152 = vld [vmem:[#allocation3 + $0x270] sm:$0xff]
    %v153 = vld [vmem:[#allocation3 + $0x278] sm:$0xff]
    %v154 = vld [vmem:[#allocation3 + $0x280] sm:$0xff]
    %v155 = vld [vmem:[#allocation3 + $0x288] sm:$0xff]
    %v156 = vld [vmem:[#allocation3 + $0x290] sm:$0xff]
    %v157 = vld [vmem:[#allocation3 + $0x298] sm:$0xff]
    %v158 = vld [vmem:[#allocation3 + $0x2a0] sm:$0xff]
    %v159 = vld [vmem:[#allocation3 + $0x2a8] sm:$0xff]
    %v160 = vld [vmem:[#allocation3 + $0x2b0] sm:$0xff]
    %v161 = vld [vmem:[#allocation3 + $0x2b8] sm:$0xff]
    %v162 = vld [vmem:[#allocation3 + $0x2c0] sm:$0xff]
    %v163 = vld [vmem:[#allocation3 + $0x2c8] sm:$0xff]
    %v164 = vld [vmem:[#allocation3 + $0x2d0] sm:$0xff]
    %v165 = vld [vmem:[#allocation3 + $0x2d8] sm:$0xff]
    %v166 = vld [vmem:[#allocation3 + $0x2e0] sm:$0xff]
    %v167 = vld [vmem:[#allocation3 + $0x2e8] sm:$0xff]
    %v168 = vld [vmem:[#allocation3 + $0x2f0] sm:$0xff]
    %v169 = vld [vmem:[#allocation3 + $0x2f8] sm:$0xff]
    %v170 = vld [vmem:[#allocation3 + $0x300] sm:$0xff]
    %v171 = vld [vmem:[#allocation3 + $0x308] sm:$0xff]
    %v172 = vld [vmem:[#allocation3 + $0x310] sm:$0xff]
    %v173 = vld [vmem:[#allocation3 + $0x318] sm:$0xff]
    %v174 = vld [vmem:[#allocation3 + $0x320] sm:$0xff]
    %v175 = vld [vmem:[#allocation3 + $0x328] sm:$0xff]
    %v176 = vld [vmem:[#allocation3 + $0x330] sm:$0xff]
    %v177 = vld [vmem:[#allocation3 + $0x338] sm:$0xff]
    %v178 = vld [vmem:[#allocation3 + $0x340] sm:$0xff]
    %v179 = vld [vmem:[#allocation3 + $0x348] sm:$0xff]
    %v180 = vld [vmem:[#allocation3 + $0x350] sm:$0xff]
    %v181 = vld [vmem:[#allocation3 + $0x358] sm:$0xff]
    %v182 = vld [vmem:[#allocation3 + $0x360] sm:$0xff]
    %v183 = vld [vmem:[#allocation3 + $0x368] sm:$0xff]
    %v184 = vld [vmem:[#allocation3 + $0x370] sm:$0xff]
    %v185 = vld [vmem:[#allocation3 + $0x378] sm:$0xff]
    %v186 = vld [vmem:[#allocation3 + $0x380] sm:$0xff]
    %v187 = vld [vmem:[#allocation3 + $0x388] sm:$0xff]
    %v188 = vld [vmem:[#allocation3 + $0x390] sm:$0xff]
    %v189 = vld [vmem:[#allocation3 + $0x398] sm:$0xff]
    %v190 = vld [vmem:[#allocation3 + $0x3a0] sm:$0xff]
    %v191 = vld [vmem:[#allocation3 + $0x3a8] sm:$0xff]
    %v192 = vld [vmem:[#allocation3 + $0x3b0] sm:$0xff]
    %v193 = vld [vmem:[#allocation3 + $0x3b8] sm:$0xff]
    %v194 = vld [vmem:[#allocation3 + $0x3c0] sm:$0xff]
    %v195 = vld [vmem:[#allocation3 + $0x3c8] sm:$0xff]
    %v196 = vld [vmem:[#allocation3 + $0x3d0] sm:$0xff]
    %v197 = vld [vmem:[#allocation3 + $0x3d8] sm:$0xff]
    %v198 = vld [vmem:[#allocation3 + $0x3e0] sm:$0xff]
    %v199 = vld [vmem:[#allocation3 + $0x3e8] sm:$0xff]
    %v200 = vld [vmem:[#allocation3 + $0x3f0] sm:$0xff]
    %v201 = vld [vmem:[#allocation3 + $0x3f8] sm:$0xff]
    %v202 = vld [vmem:[%s0] sm:$0xff]
    %v203 = vld [vmem:[%s0 + $0x8] sm:$0xff]
    %vm204 = vcmp.eq.s32.totalorder %v202, 0
    %vm205 = vcmp.eq.s32.totalorder %v203, 0
    %v206 = vsel %vm204, 1, 0
    %v207 = vsel %vm205, 1, 0
    %v208 = vcvt.s32.f32 %v206
    %v209 = vcvt.s32.f32 %v207
    %v212 = vcombine.high %v208, %v208
    %v214 = vunpack.c.l.s4 1983009808
    %v215 = vunpack.c.0.s8 %v214
    %v216 = vlaneseq
    %v217 = vshrl.u32 %v216, 7
    %v218 = vsub.s32 %v215, %v217
    %v219 = vrot.slane %v208, %v218
    %v221 = vunpack.c.l.s4 1983009808
    %v222 = vunpack.c.0.s8 %v221
    %v223 = vlaneseq
    %v224 = vshrl.u32 %v223, 7
    %v225 = vsub.s32 %v222, %v224
    %v226 = vrot.slane %v212, %v225
    %v227 = vcombine.high %v219, %v219
    %v228 = vcombine.high %v226, %v226
    %v229 = vcombine.high %v209, %v209
    %v231 = vunpack.c.l.s4 1983009808
    %v232 = vunpack.c.0.s8 %v231
    %v233 = vlaneseq
    %v234 = vshrl.u32 %v233, 7
    %v235 = vsub.s32 %v232, %v234
    %v236 = vrot.slane %v209, %v235
    %v238 = vunpack.c.l.s4 1983009808
    %v239 = vunpack.c.0.s8 %v238
    %v240 = vlaneseq
    %v241 = vshrl.u32 %v240, 7
    %v242 = vsub.s32 %v239, %v241
    %v243 = vrot.slane %v229, %v242
    %v244 = vcombine.high %v236, %v236
    %v245 = vcombine.high %v243, %v243
    %254 = vmatprep.subr.mxu0 0.0
    %255 = vmatpush1.msra.mxu0 %v89
    %256 = vmatprep.subr.mxu0 0.0
    %257 = vmatpush1.msra.mxu0 %v88
    %258 = vmatprep.subr.mxu0 0.0
    %259 = vmatpush1.msra.mxu0 %v87
    %260 = vmatprep.subr.mxu0 0.0
    %261 = vmatpush1.msra.mxu0 %v86
    %262 = vmatprep.subr.mxu0 0.0
    %263 = vmatpush1.msra.mxu0 %v85
    %264 = vmatprep.subr.mxu0 0.0
    %265 = vmatpush1.msra.mxu0 %v84
    %266 = vmatprep.subr.mxu0 0.0
    %267 = vmatpush1.msra.mxu0 %v83
    %268 = vmatprep.subr.mxu0 0.0
    %269 = vmatpush1.msra.mxu0 %v82
    %270 = vmatprep.subr.mxu0 0.0
    %271 = vmatpush1.msra.mxu0 %v81
    %272 = vmatprep.subr.mxu0 0.0
    %273 = vmatpush1.msra.mxu0 %v80
    %274 = vmatprep.subr.mxu0 0.0
    %275 = vmatpush1.msra.mxu0 %v79
    %276 = vmatprep.subr.mxu0 0.0
    %277 = vmatpush1.msra.mxu0 %v78
    %278 = vmatprep.subr.mxu0 0.0
    %279 = vmatpush1.msra.mxu0 %v77
    %280 = vmatprep.subr.mxu0 0.0
    %281 = vmatpush1.msra.mxu0 %v76
    %282 = vmatprep.subr.mxu0 0.0
    %283 = vmatpush1.msra.mxu0 %v75
    %284 = vmatprep.subr.mxu0 0.0
    %285 = vmatpush1.msra.mxu0 %v74
    %286 = vmatprep.subr.mxu0 0.0
    %287 = vmatpush2.msra.mxu0 %v105
    %288 = vmatprep.subr.mxu0 0.0
    %289 = vmatpush2.msra.mxu0 %v104
    %290 = vmatprep.subr.mxu0 0.0
    %291 = vmatpush2.msra.mxu0 %v103
    %292 = vmatprep.subr.mxu0 0.0
    %293 = vmatpush2.msra.mxu0 %v102
    %294 = vmatprep.subr.mxu0 0.0
    %295 = vmatpush2.msra.mxu0 %v101
    %296 = vmatprep.subr.mxu0 0.0
    %297 = vmatpush2.msra.mxu0 %v100
    %298 = vmatprep.subr.mxu0 0.0
    %299 = vmatpush2.msra.mxu0 %v99
    %300 = vmatprep.subr.mxu0 0.0
    %301 = vmatpush2.msra.mxu0 %v98
    %302 = vmatprep.subr.mxu0 0.0
    %303 = vmatpush2.msra.mxu0 %v97
    %304 = vmatprep.subr.mxu0 0.0
    %305 = vmatpush2.msra.mxu0 %v96
    %306 = vmatprep.subr.mxu0 0.0
    %307 = vmatpush2.msra.mxu0 %v95
    %308 = vmatprep.subr.mxu0 0.0
    %309 = vmatpush2.msra.mxu0 %v94
    %310 = vmatprep.subr.mxu0 0.0
    %311 = vmatpush2.msra.mxu0 %v93
    %312 = vmatprep.subr.mxu0 0.0
    %313 = vmatpush2.msra.mxu0 %v92
    %314 = vmatprep.subr.mxu0 0.0
    %315 = vmatpush2.msra.mxu0 %v91
    %316 = vmatprep.subr.mxu0 0.0
    %317 = vmatpush2.msra.mxu0 %v90
    %318 = vmatprep.mubr.f32.mxu0 %v227
    %319 = vmatmul.mubr.f32.gmra.mxu0 %v219
    %v320 = vpop.f32.mrf.mxu0
    %v321 = vadd.f32 0.0, %v320
    %v322 = vpop.f32.mrf.mxu0
    %323 = vdwg.mxu0
    %324 = vmatprep.subr.mxu0 0.0
    %325 = vmatpush1.msra.mxu0 %v121
    %326 = vmatprep.subr.mxu0 0.0
    %327 = vmatpush1.msra.mxu0 %v120
    %328 = vmatprep.subr.mxu0 0.0
    %329 = vmatpush1.msra.mxu0 %v119
    %330 = vmatprep.subr.mxu0 0.0
    %331 = vmatpush1.msra.mxu0 %v118
    %332 = vmatprep.subr.mxu0 0.0
    %333 = vmatpush1.msra.mxu0 %v117
    %334 = vmatprep.subr.mxu0 0.0
    %335 = vmatpush1.msra.mxu0 %v116
    %336 = vmatprep.subr.mxu0 0.0
    %337 = vmatpush1.msra.mxu0 %v115
    %338 = vmatprep.subr.mxu0 0.0
    %339 = vmatpush1.msra.mxu0 %v114
    %340 = vmatprep.subr.mxu0 0.0
    %341 = vmatpush1.msra.mxu0 %v113
    %342 = vmatprep.subr.mxu0 0.0
    %343 = vmatpush1.msra.mxu0 %v112
    %344 = vmatprep.subr.mxu0 0.0
    %345 = vmatpush1.msra.mxu0 %v111
    %346 = vmatprep.subr.mxu0 0.0
    %347 = vmatpush1.msra.mxu0 %v110
    %348 = vmatprep.subr.mxu0 0.0
    %349 = vmatpush1.msra.mxu0 %v109
    %350 = vmatprep.subr.mxu0 0.0
    %351 = vmatpush1.msra.mxu0 %v108
    %352 = vmatprep.subr.mxu0 0.0
    %353 = vmatpush1.msra.mxu0 %v107
    %354 = vmatprep.subr.mxu0 0.0
    %355 = vmatpush1.msra.mxu0 %v106
    %356 = vmatprep.subr.mxu0 0.0
    %357 = vmatpush2.msra.mxu0 %v137
    %358 = vmatprep.subr.mxu0 0.0
    %359 = vmatpush2.msra.mxu0 %v136
    %360 = vmatprep.subr.mxu0 0.0
    %361 = vmatpush2.msra.mxu0 %v135
    %362 = vmatprep.subr.mxu0 0.0
    %363 = vmatpush2.msra.mxu0 %v134
    %364 = vmatprep.subr.mxu0 0.0
    %365 = vmatpush2.msra.mxu0 %v133
    %366 = vmatprep.subr.mxu0 0.0
    %367 = vmatpush2.msra.mxu0 %v132
    %368 = vmatprep.subr.mxu0 0.0
    %369 = vmatpush2.msra.mxu0 %v131
    %370 = vmatprep.subr.mxu0 0.0
    %371 = vmatpush2.msra.mxu0 %v130
    %372 = vmatprep.subr.mxu0 0.0
    %373 = vmatpush2.msra.mxu0 %v129
    %374 = vmatprep.subr.mxu0 0.0
    %375 = vmatpush2.msra.mxu0 %v128
    %376 = vmatprep.subr.mxu0 0.0
    %377 = vmatpush2.msra.mxu0 %v127
    %378 = vmatprep.subr.mxu0 0.0
    %379 = vmatpush2.msra.mxu0 %v126
    %380 = vmatprep.subr.mxu0 0.0
    %381 = vmatpush2.msra.mxu0 %v125
    %382 = vmatprep.subr.mxu0 0.0
    %383 = vmatpush2.msra.mxu0 %v124
    %384 = vmatprep.subr.mxu0 0.0
    %385 = vmatpush2.msra.mxu0 %v123
    %386 = vmatprep.subr.mxu0 0.0
    %387 = vmatpush2.msra.mxu0 %v122
    %388 = vmatprep.mubr.f32.mxu0 %v228
    %389 = vmatmul.mubr.f32.gmra.mxu0 %v226
    %v390 = vpop.f32.mrf.mxu0
    %v391 = vadd.f32 %v321, %v390
    %v392 = vpop.f32.mrf.mxu0
    %393 = vdwg.mxu0
    %394 = vmatprep.subr.mxu0 0.0
    %395 = vmatpush1.msra.mxu0 %v153
    %396 = vmatprep.subr.mxu0 0.0
    %397 = vmatpush1.msra.mxu0 %v152
    %398 = vmatprep.subr.mxu0 0.0
    %399 = vmatpush1.msra.mxu0 %v151
    %400 = vmatprep.subr.mxu0 0.0
    %401 = vmatpush1.msra.mxu0 %v150
    %402 = vmatprep.subr.mxu0 0.0
    %403 = vmatpush1.msra.mxu0 %v149
    %404 = vmatprep.subr.mxu0 0.0
    %405 = vmatpush1.msra.mxu0 %v148
    %406 = vmatprep.subr.mxu0 0.0
    %407 = vmatpush1.msra.mxu0 %v147
    %408 = vmatprep.subr.mxu0 0.0
    %409 = vmatpush1.msra.mxu0 %v146
    %410 = vmatprep.subr.mxu0 0.0
    %411 = vmatpush1.msra.mxu0 %v145
    %412 = vmatprep.subr.mxu0 0.0
    %413 = vmatpush1.msra.mxu0 %v144
    %414 = vmatprep.subr.mxu0 0.0
    %415 = vmatpush1.msra.mxu0 %v143
    %416 = vmatprep.subr.mxu0 0.0
    %417 = vmatpush1.msra.mxu0 %v142
    %418 = vmatprep.subr.mxu0 0.0
    %419 = vmatpush1.msra.mxu0 %v141
    %420 = vmatprep.subr.mxu0 0.0
    %421 = vmatpush1.msra.mxu0 %v140
    %422 = vmatprep.subr.mxu0 0.0
    %423 = vmatpush1.msra.mxu0 %v139
    %424 = vmatprep.subr.mxu0 0.0
    %425 = vmatpush1.msra.mxu0 %v138
    %426 = vmatprep.subr.mxu0 0.0
    %427 = vmatpush2.msra.mxu0 %v169
    %428 = vmatprep.subr.mxu0 0.0
    %429 = vmatpush2.msra.mxu0 %v168
    %430 = vmatprep.subr.mxu0 0.0
    %431 = vmatpush2.msra.mxu0 %v167
    %432 = vmatprep.subr.mxu0 0.0
    %433 = vmatpush2.msra.mxu0 %v166
    %434 = vmatprep.subr.mxu0 0.0
    %435 = vmatpush2.msra.mxu0 %v165
    %436 = vmatprep.subr.mxu0 0.0
    %437 = vmatpush2.msra.mxu0 %v164
    %438 = vmatprep.subr.mxu0 0.0
    %439 = vmatpush2.msra.mxu0 %v163
    %440 = vmatprep.subr.mxu0 0.0
    %441 = vmatpush2.msra.mxu0 %v162
    %442 = vmatprep.subr.mxu0 0.0
    %443 = vmatpush2.msra.mxu0 %v161
    %444 = vmatprep.subr.mxu0 0.0
    %445 = vmatpush2.msra.mxu0 %v160
    %446 = vmatprep.subr.mxu0 0.0
    %447 = vmatpush2.msra.mxu0 %v159
    %448 = vmatprep.subr.mxu0 0.0
    %449 = vmatpush2.msra.mxu0 %v158
    %450 = vmatprep.subr.mxu0 0.0
    %451 = vmatpush2.msra.mxu0 %v157
    %452 = vmatprep.subr.mxu0 0.0
    %453 = vmatpush2.msra.mxu0 %v156
    %454 = vmatprep.subr.mxu0 0.0
    %455 = vmatpush2.msra.mxu0 %v155
    %456 = vmatprep.subr.mxu0 0.0
    %457 = vmatpush2.msra.mxu0 %v154
    %458 = vmatprep.mubr.f32.mxu0 %v244
    %459 = vmatmul.mubr.f32.gmra.mxu0 %v236
    %v460 = vpop.f32.mrf.mxu0
    %v461 = vadd.f32 %v391, %v460
    %v462 = vpop.f32.mrf.mxu0
    %463 = vdwg.mxu0
    %464 = vmatprep.subr.mxu0 0.0
    %465 = vmatpush1.msra.mxu0 %v185
    %466 = vmatprep.subr.mxu0 0.0
    %467 = vmatpush1.msra.mxu0 %v184
    %468 = vmatprep.subr.mxu0 0.0
    %469 = vmatpush1.msra.mxu0 %v183
    %470 = vmatprep.subr.mxu0 0.0
    %471 = vmatpush1.msra.mxu0 %v182
    %472 = vmatprep.subr.mxu0 0.0
    %473 = vmatpush1.msra.mxu0 %v181
    %474 = vmatprep.subr.mxu0 0.0
    %475 = vmatpush1.msra.mxu0 %v180
    %476 = vmatprep.subr.mxu0 0.0
    %477 = vmatpush1.msra.mxu0 %v179
    %478 = vmatprep.subr.mxu0 0.0
    %479 = vmatpush1.msra.mxu0 %v178
    %480 = vmatprep.subr.mxu0 0.0
    %481 = vmatpush1.msra.mxu0 %v177
    %482 = vmatprep.subr.mxu0 0.0
    %483 = vmatpush1.msra.mxu0 %v176
    %484 = vmatprep.subr.mxu0 0.0
    %485 = vmatpush1.msra.mxu0 %v175
    %486 = vmatprep.subr.mxu0 0.0
    %487 = vmatpush1.msra.mxu0 %v174
    %488 = vmatprep.subr.mxu0 0.0
    %489 = vmatpush1.msra.mxu0 %v173
    %490 = vmatprep.subr.mxu0 0.0
    %491 = vmatpush1.msra.mxu0 %v172
    %492 = vmatprep.subr.mxu0 0.0
    %493 = vmatpush1.msra.mxu0 %v171
    %494 = vmatprep.subr.mxu0 0.0
    %495 = vmatpush1.msra.mxu0 %v170
    %496 = vmatprep.subr.mxu0 0.0
    %497 = vmatpush2.msra.mxu0 %v201
    %498 = vmatprep.subr.mxu0 0.0
    %499 = vmatpush2.msra.mxu0 %v200
    %500 = vmatprep.subr.mxu0 0.0
    %501 = vmatpush2.msra.mxu0 %v199
    %502 = vmatprep.subr.mxu0 0.0
    %503 = vmatpush2.msra.mxu0 %v198
    %504 = vmatprep.subr.mxu0 0.0
    %505 = vmatpush2.msra.mxu0 %v197
    %506 = vmatprep.subr.mxu0 0.0
    %507 = vmatpush2.msra.mxu0 %v196
    %508 = vmatprep.subr.mxu0 0.0
    %509 = vmatpush2.msra.mxu0 %v195
    %510 = vmatprep.subr.mxu0 0.0
    %511 = vmatpush2.msra.mxu0 %v194
    %512 = vmatprep.subr.mxu0 0.0
    %513 = vmatpush2.msra.mxu0 %v193
    %514 = vmatprep.subr.mxu0 0.0
    %515 = vmatpush2.msra.mxu0 %v192
    %516 = vmatprep.subr.mxu0 0.0
    %517 = vmatpush2.msra.mxu0 %v191
    %518 = vmatprep.subr.mxu0 0.0
    %519 = vmatpush2.msra.mxu0 %v190
    %520 = vmatprep.subr.mxu0 0.0
    %521 = vmatpush2.msra.mxu0 %v189
    %522 = vmatprep.subr.mxu0 0.0
    %523 = vmatpush2.msra.mxu0 %v188
    %524 = vmatprep.subr.mxu0 0.0
    %525 = vmatpush2.msra.mxu0 %v187
    %526 = vmatprep.subr.mxu0 0.0
    %527 = vmatpush2.msra.mxu0 %v186
    %528 = vmatprep.mubr.f32.mxu0 %v245
    %529 = vmatmul.mubr.f32.gmra.mxu0 %v243
    %v530 = vpop.f32.mrf.mxu0
    %v531 = vadd.f32 %v461, %v530
    %v532 = vpop.f32.mrf.mxu0
    %533 = vdwg.mxu0
    %534 = vst [vmem:[#allocation2] sm:$0x3] %v531
    %v535 = vld [vmem:[%s0 + $0x10] sm:$0xff]
    %v536 = vld [vmem:[%s0 + $0x18] sm:$0xff]
    %vm537 = vcmp.eq.s32.totalorder %v535, 0
    %vm538 = vcmp.eq.s32.totalorder %v536, 0
    %v539 = vsel %vm537, 1, 0
    %v540 = vsel %vm538, 1, 0
    %v541 = vcvt.s32.f32 %v539
    %v542 = vcvt.s32.f32 %v540
    %v545 = vcombine.high %v541, %v541
    %v547 = vunpack.c.l.s4 1983009808
    %v548 = vunpack.c.0.s8 %v547
    %v549 = vlaneseq
    %v550 = vshrl.u32 %v549, 7
    %v551 = vsub.s32 %v548, %v550
    %v552 = vrot.slane %v541, %v551
    %v554 = vunpack.c.l.s4 1983009808
    %v555 = vunpack.c.0.s8 %v554
    %v556 = vlaneseq
    %v557 = vshrl.u32 %v556, 7
    %v558 = vsub.s32 %v555, %v557
    %v559 = vrot.slane %v545, %v558
    %v560 = vcombine.high %v552, %v552
    %v561 = vcombine.high %v559, %v559
    %v562 = vcombine.high %v542, %v542
    %v564 = vunpack.c.l.s4 1983009808
    %v565 = vunpack.c.0.s8 %v564
    %v566 = vlaneseq
    %v567 = vshrl.u32 %v566, 7
    %v568 = vsub.s32 %v565, %v567
    %v569 = vrot.slane %v542, %v568
    %v571 = vunpack.c.l.s4 1983009808
    %v572 = vunpack.c.0.s8 %v571
    %v573 = vlaneseq
    %v574 = vshrl.u32 %v573, 7
    %v575 = vsub.s32 %v572, %v574
    %v576 = vrot.slane %v562, %v575
    %v577 = vcombine.high %v569, %v569
    %v578 = vcombine.high %v576, %v576
    %587 = vmatprep.subr.mxu0 0.0
    %588 = vmatpush1.msra.mxu0 %v89
    %589 = vmatprep.subr.mxu0 0.0
    %590 = vmatpush1.msra.mxu0 %v88
    %591 = vmatprep.subr.mxu0 0.0
    %592 = vmatpush1.msra.mxu0 %v87
    %593 = vmatprep.subr.mxu0 0.0
    %594 = vmatpush1.msra.mxu0 %v86
    %595 = vmatprep.subr.mxu0 0.0
    %596 = vmatpush1.msra.mxu0 %v85
    %597 = vmatprep.subr.mxu0 0.0
    %598 = vmatpush1.msra.mxu0 %v84
    %599 = vmatprep.subr.mxu0 0.0
    %600 = vmatpush1.msra.mxu0 %v83
    %601 = vmatprep.subr.mxu0 0.0
    %602 = vmatpush1.msra.mxu0 %v82
    %603 = vmatprep.subr.mxu0 0.0
    %604 = vmatpush1.msra.mxu0 %v81
    %605 = vmatprep.subr.mxu0 0.0
    %606 = vmatpush1.msra.mxu0 %v80
    %607 = vmatprep.subr.mxu0 0.0
    %608 = vmatpush1.msra.mxu0 %v79
    %609 = vmatprep.subr.mxu0 0.0
    %610 = vmatpush1.msra.mxu0 %v78
    %611 = vmatprep.subr.mxu0 0.0
    %612 = vmatpush1.msra.mxu0 %v77
    %613 = vmatprep.subr.mxu0 0.0
    %614 = vmatpush1.msra.mxu0 %v76
    %615 = vmatprep.subr.mxu0 0.0
    %616 = vmatpush1.msra.mxu0 %v75
    %617 = vmatprep.subr.mxu0 0.0
    %618 = vmatpush1.msra.mxu0 %v74
    %619 = vmatprep.subr.mxu0 0.0
    %620 = vmatpush2.msra.mxu0 %v105
    %621 = vmatprep.subr.mxu0 0.0
    %622 = vmatpush2.msra.mxu0 %v104
    %623 = vmatprep.subr.mxu0 0.0
    %624 = vmatpush2.msra.mxu0 %v103
    %625 = vmatprep.subr.mxu0 0.0
    %626 = vmatpush2.msra.mxu0 %v102
    %627 = vmatprep.subr.mxu0 0.0
    %628 = vmatpush2.msra.mxu0 %v101
    %629 = vmatprep.subr.mxu0 0.0
    %630 = vmatpush2.msra.mxu0 %v100
    %631 = vmatprep.subr.mxu0 0.0
    %632 = vmatpush2.msra.mxu0 %v99
    %633 = vmatprep.subr.mxu0 0.0
    %634 = vmatpush2.msra.mxu0 %v98
    %635 = vmatprep.subr.mxu0 0.0
    %636 = vmatpush2.msra.mxu0 %v97
    %637 = vmatprep.subr.mxu0 0.0
    %638 = vmatpush2.msra.mxu0 %v96
    %639 = vmatprep.subr.mxu0 0.0
    %640 = vmatpush2.msra.mxu0 %v95
    %641 = vmatprep.subr.mxu0 0.0
    %642 = vmatpush2.msra.mxu0 %v94
    %643 = vmatprep.subr.mxu0 0.0
    %644 = vmatpush2.msra.mxu0 %v93
    %645 = vmatprep.subr.mxu0 0.0
    %646 = vmatpush2.msra.mxu0 %v92
    %647 = vmatprep.subr.mxu0 0.0
    %648 = vmatpush2.msra.mxu0 %v91
    %649 = vmatprep.subr.mxu0 0.0
    %650 = vmatpush2.msra.mxu0 %v90
    %651 = vmatprep.mubr.f32.mxu0 %v560
    %652 = vmatmul.mubr.f32.gmra.mxu0 %v552
    %v653 = vpop.f32.mrf.mxu0
    %v654 = vadd.f32 0.0, %v653
    %v655 = vpop.f32.mrf.mxu0
    %656 = vdwg.mxu0
    %657 = vmatprep.subr.mxu0 0.0
    %658 = vmatpush1.msra.mxu0 %v121
    %659 = vmatprep.subr.mxu0 0.0
    %660 = vmatpush1.msra.mxu0 %v120
    %661 = vmatprep.subr.mxu0 0.0
    %662 = vmatpush1.msra.mxu0 %v119
    %663 = vmatprep.subr.mxu0 0.0
    %664 = vmatpush1.msra.mxu0 %v118
    %665 = vmatprep.subr.mxu0 0.0
    %666 = vmatpush1.msra.mxu0 %v117
    %667 = vmatprep.subr.mxu0 0.0
    %668 = vmatpush1.msra.mxu0 %v116
    %669 = vmatprep.subr.mxu0 0.0
    %670 = vmatpush1.msra.mxu0 %v115
    %671 = vmatprep.subr.mxu0 0.0
    %672 = vmatpush1.msra.mxu0 %v114
    %673 = vmatprep.subr.mxu0 0.0
    %674 = vmatpush1.msra.mxu0 %v113
    %675 = vmatprep.subr.mxu0 0.0
    %676 = vmatpush1.msra.mxu0 %v112
    %677 = vmatprep.subr.mxu0 0.0
    %678 = vmatpush1.msra.mxu0 %v111
    %679 = vmatprep.subr.mxu0 0.0
    %680 = vmatpush1.msra.mxu0 %v110
    %681 = vmatprep.subr.mxu0 0.0
    %682 = vmatpush1.msra.mxu0 %v109
    %683 = vmatprep.subr.mxu0 0.0
    %684 = vmatpush1.msra.mxu0 %v108
    %685 = vmatprep.subr.mxu0 0.0
    %686 = vmatpush1.msra.mxu0 %v107
    %687 = vmatprep.subr.mxu0 0.0
    %688 = vmatpush1.msra.mxu0 %v106
    %689 = vmatprep.subr.mxu0 0.0
    %690 = vmatpush2.msra.mxu0 %v137
    %691 = vmatprep.subr.mxu0 0.0
    %692 = vmatpush2.msra.mxu0 %v136
    %693 = vmatprep.subr.mxu0 0.0
    %694 = vmatpush2.msra.mxu0 %v135
    %695 = vmatprep.subr.mxu0 0.0
    %696 = vmatpush2.msra.mxu0 %v134
    %697 = vmatprep.subr.mxu0 0.0
    %698 = vmatpush2.msra.mxu0 %v133
    %699 = vmatprep.subr.mxu0 0.0
    %700 = vmatpush2.msra.mxu0 %v132
    %701 = vmatprep.subr.mxu0 0.0
    %702 = vmatpush2.msra.mxu0 %v131
    %703 = vmatprep.subr.mxu0 0.0
    %704 = vmatpush2.msra.mxu0 %v130
    %705 = vmatprep.subr.mxu0 0.0
    %706 = vmatpush2.msra.mxu0 %v129
    %707 = vmatprep.subr.mxu0 0.0
    %708 = vmatpush2.msra.mxu0 %v128
    %709 = vmatprep.subr.mxu0 0.0
    %710 = vmatpush2.msra.mxu0 %v127
    %711 = vmatprep.subr.mxu0 0.0
    %712 = vmatpush2.msra.mxu0 %v126
    %713 = vmatprep.subr.mxu0 0.0
    %714 = vmatpush2.msra.mxu0 %v125
    %715 = vmatprep.subr.mxu0 0.0
    %716 = vmatpush2.msra.mxu0 %v124
    %717 = vmatprep.subr.mxu0 0.0
    %718 = vmatpush2.msra.mxu0 %v123
    %719 = vmatprep.subr.mxu0 0.0
    %720 = vmatpush2.msra.mxu0 %v122
    %721 = vmatprep.mubr.f32.mxu0 %v561
    %722 = vmatmul.mubr.f32.gmra.mxu0 %v559
    %v723 = vpop.f32.mrf.mxu0
    %v724 = vadd.f32 %v654, %v723
    %v725 = vpop.f32.mrf.mxu0
    %726 = vdwg.mxu0
    %727 = vmatprep.subr.mxu0 0.0
    %728 = vmatpush1.msra.mxu0 %v153
    %729 = vmatprep.subr.mxu0 0.0
    %730 = vmatpush1.msra.mxu0 %v152
    %731 = vmatprep.subr.mxu0 0.0
    %732 = vmatpush1.msra.mxu0 %v151
    %733 = vmatprep.subr.mxu0 0.0
    %734 = vmatpush1.msra.mxu0 %v150
    %735 = vmatprep.subr.mxu0 0.0
    %736 = vmatpush1.msra.mxu0 %v149
    %737 = vmatprep.subr.mxu0 0.0
    %738 = vmatpush1.msra.mxu0 %v148
    %739 = vmatprep.subr.mxu0 0.0
    %740 = vmatpush1.msra.mxu0 %v147
    %741 = vmatprep.subr.mxu0 0.0
    %742 = vmatpush1.msra.mxu0 %v146
    %743 = vmatprep.subr.mxu0 0.0
    %744 = vmatpush1.msra.mxu0 %v145
    %745 = vmatprep.subr.mxu0 0.0
    %746 = vmatpush1.msra.mxu0 %v144
    %747 = vmatprep.subr.mxu0 0.0
    %748 = vmatpush1.msra.mxu0 %v143
    %749 = vmatprep.subr.mxu0 0.0
    %750 = vmatpush1.msra.mxu0 %v142
    %751 = vmatprep.subr.mxu0 0.0
    %752 = vmatpush1.msra.mxu0 %v141
    %753 = vmatprep.subr.mxu0 0.0
    %754 = vmatpush1.msra.mxu0 %v140
    %755 = vmatprep.subr.mxu0 0.0
    %756 = vmatpush1.msra.mxu0 %v139
    %757 = vmatprep.subr.mxu0 0.0
    %758 = vmatpush1.msra.mxu0 %v138
    %759 = vmatprep.subr.mxu0 0.0
    %760 = vmatpush2.msra.mxu0 %v169
    %761 = vmatprep.subr.mxu0 0.0
    %762 = vmatpush2.msra.mxu0 %v168
    %763 = vmatprep.subr.mxu0 0.0
    %764 = vmatpush2.msra.mxu0 %v167
    %765 = vmatprep.subr.mxu0 0.0
    %766 = vmatpush2.msra.mxu0 %v166
    %767 = vmatprep.subr.mxu0 0.0
    %768 = vmatpush2.msra.mxu0 %v165
    %769 = vmatprep.subr.mxu0 0.0
    %770 = vmatpush2.msra.mxu0 %v164
    %771 = vmatprep.subr.mxu0 0.0
    %772 = vmatpush2.msra.mxu0 %v163
    %773 = vmatprep.subr.mxu0 0.0
    %774 = vmatpush2.msra.mxu0 %v162
    %775 = vmatprep.subr.mxu0 0.0
    %776 = vmatpush2.msra.mxu0 %v161
    %777 = vmatprep.subr.mxu0 0.0
    %778 = vmatpush2.msra.mxu0 %v160
    %779 = vmatprep.subr.mxu0 0.0
    %780 = vmatpush2.msra.mxu0 %v159
    %781 = vmatprep.subr.mxu0 0.0
    %782 = vmatpush2.msra.mxu0 %v158
    %783 = vmatprep.subr.mxu0 0.0
    %784 = vmatpush2.msra.mxu0 %v157
    %785 = vmatprep.subr.mxu0 0.0
    %786 = vmatpush2.msra.mxu0 %v156
    %787 = vmatprep.subr.mxu0 0.0
    %788 = vmatpush2.msra.mxu0 %v155
    %789 = vmatprep.subr.mxu0 0.0
    %790 = vmatpush2.msra.mxu0 %v154
    %791 = vmatprep.mubr.f32.mxu0 %v577
    %792 = vmatmul.mubr.f32.gmra.mxu0 %v569
    %v793 = vpop.f32.mrf.mxu0
    %v794 = vadd.f32 %v724, %v793
    %v795 = vpop.f32.mrf.mxu0
    %796 = vdwg.mxu0
    %797 = vmatprep.subr.mxu0 0.0
    %798 = vmatpush1.msra.mxu0 %v185
    %799 = vmatprep.subr.mxu0 0.0
    %800 = vmatpush1.msra.mxu0 %v184
    %801 = vmatprep.subr.mxu0 0.0
    %802 = vmatpush1.msra.mxu0 %v183
    %803 = vmatprep.subr.mxu0 0.0
    %804 = vmatpush1.msra.mxu0 %v182
    %805 = vmatprep.subr.mxu0 0.0
    %806 = vmatpush1.msra.mxu0 %v181
    %807 = vmatprep.subr.mxu0 0.0
    %808 = vmatpush1.msra.mxu0 %v180
    %809 = vmatprep.subr.mxu0 0.0
    %810 = vmatpush1.msra.mxu0 %v179
    %811 = vmatprep.subr.mxu0 0.0
    %812 = vmatpush1.msra.mxu0 %v178
    %813 = vmatprep.subr.mxu0 0.0
    %814 = vmatpush1.msra.mxu0 %v177
    %815 = vmatprep.subr.mxu0 0.0
    %816 = vmatpush1.msra.mxu0 %v176
    %817 = vmatprep.subr.mxu0 0.0
    %818 = vmatpush1.msra.mxu0 %v175
    %819 = vmatprep.subr.mxu0 0.0
    %820 = vmatpush1.msra.mxu0 %v174
    %821 = vmatprep.subr.mxu0 0.0
    %822 = vmatpush1.msra.mxu0 %v173
    %823 = vmatprep.subr.mxu0 0.0
    %824 = vmatpush1.msra.mxu0 %v172
    %825 = vmatprep.subr.mxu0 0.0
    %826 = vmatpush1.msra.mxu0 %v171
    %827 = vmatprep.subr.mxu0 0.0
    %828 = vmatpush1.msra.mxu0 %v170
    %829 = vmatprep.subr.mxu0 0.0
    %830 = vmatpush2.msra.mxu0 %v201
    %831 = vmatprep.subr.mxu0 0.0
    %832 = vmatpush2.msra.mxu0 %v200
    %833 = vmatprep.subr.mxu0 0.0
    %834 = vmatpush2.msra.mxu0 %v199
    %835 = vmatprep.subr.mxu0 0.0
    %836 = vmatpush2.msra.mxu0 %v198
    %837 = vmatprep.subr.mxu0 0.0
    %838 = vmatpush2.msra.mxu0 %v197
    %839 = vmatprep.subr.mxu0 0.0
    %840 = vmatpush2.msra.mxu0 %v196
    %841 = vmatprep.subr.mxu0 0.0
    %842 = vmatpush2.msra.mxu0 %v195
    %843 = vmatprep.subr.mxu0 0.0
    %844 = vmatpush2.msra.mxu0 %v194
    %845 = vmatprep.subr.mxu0 0.0
    %846 = vmatpush2.msra.mxu0 %v193
    %847 = vmatprep.subr.mxu0 0.0
    %848 = vmatpush2.msra.mxu0 %v192
    %849 = vmatprep.subr.mxu0 0.0
    %850 = vmatpush2.msra.mxu0 %v191
    %851 = vmatprep.subr.mxu0 0.0
    %852 = vmatpush2.msra.mxu0 %v190
    %853 = vmatprep.subr.mxu0 0.0
    %854 = vmatpush2.msra.mxu0 %v189
    %855 = vmatprep.subr.mxu0 0.0
    %856 = vmatpush2.msra.mxu0 %v188
    %857 = vmatprep.subr.mxu0 0.0
    %858 = vmatpush2.msra.mxu0 %v187
    %859 = vmatprep.subr.mxu0 0.0
    %860 = vmatpush2.msra.mxu0 %v186
    %861 = vmatprep.mubr.f32.mxu0 %v578
    %862 = vmatmul.mubr.f32.gmra.mxu0 %v576
    %v863 = vpop.f32.mrf.mxu0
    %v864 = vadd.f32 %v794, %v863
    %v865 = vpop.f32.mrf.mxu0
    %866 = vdwg.mxu0
    %867 = vst [vmem:[#allocation2 + $0x2] sm:$0x3] %v864
    %v868 = vld [vmem:[#allocation5] sm:$0xff]
    %v869 = vld [vmem:[#allocation5 + $0x8] sm:$0xff]
    %v870 = vld [vmem:[#allocation5 + $0x10] sm:$0xff]
    %v871 = vld [vmem:[#allocation5 + $0x18] sm:$0xff]
    %v872 = vld [vmem:[#allocation5 + $0x20] sm:$0xff]
    %v873 = vld [vmem:[#allocation5 + $0x28] sm:$0xff]
    %v874 = vld [vmem:[#allocation5 + $0x30] sm:$0xff]
    %v875 = vld [vmem:[#allocation5 + $0x38] sm:$0xff]
    %v876 = vld [vmem:[#allocation5 + $0x40] sm:$0xff]
    %v877 = vld [vmem:[#allocation5 + $0x48] sm:$0xff]
    %v878 = vld [vmem:[#allocation5 + $0x50] sm:$0xff]
    %v879 = vld [vmem:[#allocation5 + $0x58] sm:$0xff]
    %v880 = vld [vmem:[#allocation5 + $0x60] sm:$0xff]
    %v881 = vld [vmem:[#allocation5 + $0x68] sm:$0xff]
    %v882 = vld [vmem:[#allocation5 + $0x70] sm:$0xff]
    %v883 = vld [vmem:[#allocation5 + $0x78] sm:$0xff]
    %v884 = vld [vmem:[#allocation5 + $0x80] sm:$0xff]
    %v885 = vld [vmem:[#allocation5 + $0x88] sm:$0xff]
    %v886 = vld [vmem:[#allocation5 + $0x90] sm:$0xff]
    %v887 = vld [vmem:[#allocation5 + $0x98] sm:$0xff]
    %v888 = vld [vmem:[#allocation5 + $0xa0] sm:$0xff]
    %v889 = vld [vmem:[#allocation5 + $0xa8] sm:$0xff]
    %v890 = vld [vmem:[#allocation5 + $0xb0] sm:$0xff]
    %v891 = vld [vmem:[#allocation5 + $0xb8] sm:$0xff]
    %v892 = vld [vmem:[#allocation5 + $0xc0] sm:$0xff]
    %v893 = vld [vmem:[#allocation5 + $0xc8] sm:$0xff]
    %v894 = vld [vmem:[#allocation5 + $0xd0] sm:$0xff]
    %v895 = vld [vmem:[#allocation5 + $0xd8] sm:$0xff]
    %v896 = vld [vmem:[#allocation5 + $0xe0] sm:$0xff]
    %v897 = vld [vmem:[#allocation5 + $0xe8] sm:$0xff]
    %v898 = vld [vmem:[#allocation5 + $0xf0] sm:$0xff]
    %v899 = vld [vmem:[#allocation5 + $0xf8] sm:$0xff]
    %v900 = vld [vmem:[%s3] sm:$0x1]
    %v901 = vld [vmem:[%s4] sm:$0x1]
    %v902 = vld [vmem:[#allocation2] sm:$0xf]
    %v904 = vlaneseq
    %v905 = vshrl.u32 %v904, 7
    %v906 = vsub.s32 0, %v905
    %v907 = vrot.slane %v900, %v906
    %v911 = vunpack.c.l.s4 1983009808
    %v912 = vunpack.c.0.s8 %v911
    %v913 = vlaneseq
    %v914 = vshrl.u32 %v913, 7
    %v915 = vsub.s32 %v912, %v914
    %v916 = vrot.slane %v902, %v915
    %v917 = vcombine.high %v916, %v916
    %920 = vmatprep.subr.mxu0 0.0
    %921 = vmatpush1.msra.mxu0 %v883
    %922 = vmatprep.subr.mxu0 0.0
    %923 = vmatpush1.msra.mxu0 %v882
    %924 = vmatprep.subr.mxu0 0.0
    %925 = vmatpush1.msra.mxu0 %v881
    %926 = vmatprep.subr.mxu0 0.0
    %927 = vmatpush1.msra.mxu0 %v880
    %928 = vmatprep.subr.mxu0 0.0
    %929 = vmatpush1.msra.mxu0 %v879
    %930 = vmatprep.subr.mxu0 0.0
    %931 = vmatpush1.msra.mxu0 %v878
    %932 = vmatprep.subr.mxu0 0.0
    %933 = vmatpush1.msra.mxu0 %v877
    %934 = vmatprep.subr.mxu0 0.0
    %935 = vmatpush1.msra.mxu0 %v876
    %936 = vmatprep.subr.mxu0 0.0
    %937 = vmatpush1.msra.mxu0 %v875
    %938 = vmatprep.subr.mxu0 0.0
    %939 = vmatpush1.msra.mxu0 %v874
    %940 = vmatprep.subr.mxu0 0.0
    %941 = vmatpush1.msra.mxu0 %v873
    %942 = vmatprep.subr.mxu0 0.0
    %943 = vmatpush1.msra.mxu0 %v872
    %944 = vmatprep.subr.mxu0 0.0
    %945 = vmatpush1.msra.mxu0 %v871
    %946 = vmatprep.subr.mxu0 0.0
    %947 = vmatpush1.msra.mxu0 %v870
    %948 = vmatprep.subr.mxu0 0.0
    %949 = vmatpush1.msra.mxu0 %v869
    %950 = vmatprep.subr.mxu0 0.0
    %951 = vmatpush1.msra.mxu0 %v868
    %952 = vmatprep.subr.mxu0 0.0
    %953 = vmatpush2.msra.mxu0 %v899
    %954 = vmatprep.subr.mxu0 0.0
    %955 = vmatpush2.msra.mxu0 %v898
    %956 = vmatprep.subr.mxu0 0.0
    %957 = vmatpush2.msra.mxu0 %v897
    %958 = vmatprep.subr.mxu0 0.0
    %959 = vmatpush2.msra.mxu0 %v896
    %960 = vmatprep.subr.mxu0 0.0
    %961 = vmatpush2.msra.mxu0 %v895
    %962 = vmatprep.subr.mxu0 0.0
    %963 = vmatpush2.msra.mxu0 %v894
    %964 = vmatprep.subr.mxu0 0.0
    %965 = vmatpush2.msra.mxu0 %v893
    %966 = vmatprep.subr.mxu0 0.0
    %967 = vmatpush2.msra.mxu0 %v892
    %968 = vmatprep.subr.mxu0 0.0
    %969 = vmatpush2.msra.mxu0 %v891
    %970 = vmatprep.subr.mxu0 0.0
    %971 = vmatpush2.msra.mxu0 %v890
    %972 = vmatprep.subr.mxu0 0.0
    %973 = vmatpush2.msra.mxu0 %v889
    %974 = vmatprep.subr.mxu0 0.0
    %975 = vmatpush2.msra.mxu0 %v888
    %976 = vmatprep.subr.mxu0 0.0
    %977 = vmatpush2.msra.mxu0 %v887
    %978 = vmatprep.subr.mxu0 0.0
    %979 = vmatpush2.msra.mxu0 %v886
    %980 = vmatprep.subr.mxu0 0.0
    %981 = vmatpush2.msra.mxu0 %v885
    %982 = vmatprep.subr.mxu0 0.0
    %983 = vmatpush2.msra.mxu0 %v884
    %984 = vmatprep.mubr.f32.mxu0 %v917
    %985 = vmatmul.mubr.f32.gmra.mxu0 %v916
    %v986 = vpop.f32.mrf.mxu0
    %v987 = vadd.f32 %v907, %v986
    %v988 = vpop.f32.mrf.mxu0
    %989 = vdwg.mxu0
    %v990 = vmax.f32 %v987, 0.0
    %vm991 = vcmp.gt.s32.totalorder %v901, 0
    %v992 = vsel %vm991, 1, 0
    %v993 = vlaneseq
    %v994 = vshrl.u32 %v993, 7
    %v995 = vsub.s32 0, %v994
    %v996 = vrot.slane %v992, %v995
    %vm997 = vcmp.eq.s32.totalorder %v996, 1
    %v998 = vsel %vm997, %v990, 0.0
    %v999 = vmax.f32 %v998, 0.0
    %v1000 = vld [vmem:[#allocation2] sm:$0x3f]
    %v1002 = vcombine.high %v1000, %v1000
    %v1004 = vunpack.c.l.s4 1983009808
    %v1005 = vunpack.c.0.s8 %v1004
    %v1006 = vlaneseq
    %v1007 = vshrl.u32 %v1006, 7
    %v1008 = vsub.s32 %v1005, %v1007
    %v1009 = vrot.slane %v1000, %v1008
    %v1011 = vunpack.c.l.s4 1983009808
    %v1012 = vunpack.c.0.s8 %v1011
    %v1013 = vlaneseq
    %v1014 = vshrl.u32 %v1013, 7
    %v1015 = vsub.s32 %v1012, %v1014
    %v1016 = vrot.slane %v1002, %v1015
    %v1017 = vcombine.high %v1009, %v1009
    %1018 = vrot.lane.b32.xlu0 %v1009, 127
    %v1019 = vpop.permute.xlu0 %1018
    %1020 = vrot.lane.b32.xlu0 %v1017, 127
    %v1021 = vpop.permute.xlu0 %1020
    %1022 = vrot.lane.b32.xlu0 %v1016, 127
    %v1023 = vpop.permute.xlu0 %1022
    %vm1024 = vcmask 1039360
    %v1025 = vsel %vm1024, %v1019, %v1021
    %v1026 = vsel %vm1024, %v1021, %v1023
    %1029 = vmatprep.subr.mxu0 0.0
    %1030 = vmatpush1.msra.mxu0 %v883
    %1031 = vmatprep.subr.mxu0 0.0
    %1032 = vmatpush1.msra.mxu0 %v882
    %1033 = vmatprep.subr.mxu0 0.0
    %1034 = vmatpush1.msra.mxu0 %v881
    %1035 = vmatprep.subr.mxu0 0.0
    %1036 = vmatpush1.msra.mxu0 %v880
    %1037 = vmatprep.subr.mxu0 0.0
    %1038 = vmatpush1.msra.mxu0 %v879
    %1039 = vmatprep.subr.mxu0 0.0
    %1040 = vmatpush1.msra.mxu0 %v878
    %1041 = vmatprep.subr.mxu0 0.0
    %1042 = vmatpush1.msra.mxu0 %v877
    %1043 = vmatprep.subr.mxu0 0.0
    %1044 = vmatpush1.msra.mxu0 %v876
    %1045 = vmatprep.subr.mxu0 0.0
    %1046 = vmatpush1.msra.mxu0 %v875
    %1047 = vmatprep.subr.mxu0 0.0
    %1048 = vmatpush1.msra.mxu0 %v874
    %1049 = vmatprep.subr.mxu0 0.0
    %1050 = vmatpush1.msra.mxu0 %v873
    %1051 = vmatprep.subr.mxu0 0.0
    %1052 = vmatpush1.msra.mxu0 %v872
    %1053 = vmatprep.subr.mxu0 0.0
    %1054 = vmatpush1.msra.mxu0 %v871
    %1055 = vmatprep.subr.mxu0 0.0
    %1056 = vmatpush1.msra.mxu0 %v870
    %1057 = vmatprep.subr.mxu0 0.0
    %1058 = vmatpush1.msra.mxu0 %v869
    %1059 = vmatprep.subr.mxu0 0.0
    %1060 = vmatpush1.msra.mxu0 %v868
    %1061 = vmatprep.subr.mxu0 0.0
    %1062 = vmatpush2.msra.mxu0 %v899
    %1063 = vmatprep.subr.mxu0 0.0
    %1064 = vmatpush2.msra.mxu0 %v898
    %1065 = vmatprep.subr.mxu0 0.0
    %1066 = vmatpush2.msra.mxu0 %v897
    %1067 = vmatprep.subr.mxu0 0.0
    %1068 = vmatpush2.msra.mxu0 %v896
    %1069 = vmatprep.subr.mxu0 0.0
    %1070 = vmatpush2.msra.mxu0 %v895
    %1071 = vmatprep.subr.mxu0 0.0
    %1072 = vmatpush2.msra.mxu0 %v894
    %1073 = vmatprep.subr.mxu0 0.0
    %1074 = vmatpush2.msra.mxu0 %v893
    %1075 = vmatprep.subr.mxu0 0.0
    %1076 = vmatpush2.msra.mxu0 %v892
    %1077 = vmatprep.subr.mxu0 0.0
    %1078 = vmatpush2.msra.mxu0 %v891
    %1079 = vmatprep.subr.mxu0 0.0
    %1080 = vmatpush2.msra.mxu0 %v890
    %1081 = vmatprep.subr.mxu0 0.0
    %1082 = vmatpush2.msra.mxu0 %v889
    %1083 = vmatprep.subr.mxu0 0.0
    %1084 = vmatpush2.msra.mxu0 %v888
    %1085 = vmatprep.subr.mxu0 0.0
    %1086 = vmatpush2.msra.mxu0 %v887
    %1087 = vmatprep.subr.mxu0 0.0
    %1088 = vmatpush2.msra.mxu0 %v886
    %1089 = vmatprep.subr.mxu0 0.0
    %1090 = vmatpush2.msra.mxu0 %v885
    %1091 = vmatprep.subr.mxu0 0.0
    %1092 = vmatpush2.msra.mxu0 %v884
    %1093 = vmatprep.mubr.f32.mxu0 %v1026
    %1094 = vmatmul.mubr.f32.gmra.mxu0 %v1025
    %v1095 = vpop.f32.mrf.mxu0
    %v1096 = vadd.f32 %v907, %v1095
    %v1097 = vpop.f32.mrf.mxu0
    %1098 = vdwg.mxu0
    %v1099 = vmax.f32 %v1096, 0.0
    %vm1100 = vcmp.gt.s32.totalorder %v901, 1
    %v1101 = vsel %vm1100, 1, 0
    %v1102 = vlaneseq
    %v1103 = vshrl.u32 %v1102, 7
    %v1104 = vsub.s32 0, %v1103
    %v1105 = vrot.slane %v1101, %v1104
    %vm1106 = vcmp.eq.s32.totalorder %v1105, 1
    %v1107 = vsel %vm1106, %v1099, 0.0
    %v1108 = vmax.f32 %v999, %v1107
    %v1109 = vld [vmem:[#allocation2] sm:$0x3f]
    %v1111 = vcombine.high %v1109, %v1109
    %v1113 = vunpack.c.l.s4 1983009808
    %v1114 = vunpack.c.0.s8 %v1113
    %v1115 = vlaneseq
    %v1116 = vshrl.u32 %v1115, 7
    %v1117 = vsub.s32 %v1114, %v1116
    %v1118 = vrot.slane %v1109, %v1117
    %v1120 = vunpack.c.l.s4 1983009808
    %v1121 = vunpack.c.0.s8 %v1120
    %v1122 = vlaneseq
    %v1123 = vshrl.u32 %v1122, 7
    %v1124 = vsub.s32 %v1121, %v1123
    %v1125 = vrot.slane %v1111, %v1124
    %v1126 = vcombine.high %v1118, %v1118
    %1127 = vrot.lane.b32.xlu0 %v1118, 126
    %v1128 = vpop.permute.xlu0 %1127
    %1129 = vrot.lane.b32.xlu0 %v1126, 126
    %v1130 = vpop.permute.xlu0 %1129
    %1131 = vrot.lane.b32.xlu0 %v1125, 126
    %v1132 = vpop.permute.xlu0 %1131
    %vm1133 = vcmask 1031168
    %v1134 = vsel %vm1133, %v1128, %v1130
    %v1135 = vsel %vm1133, %v1130, %v1132
    %1138 = vmatprep.subr.mxu0 0.0
    %1139 = vmatpush1.msra.mxu0 %v883
    %1140 = vmatprep.subr.mxu0 0.0
    %1141 = vmatpush1.msra.mxu0 %v882
    %1142 = vmatprep.subr.mxu0 0.0
    %1143 = vmatpush1.msra.mxu0 %v881
    %1144 = vmatprep.subr.mxu0 0.0
    %1145 = vmatpush1.msra.mxu0 %v880
    %1146 = vmatprep.subr.mxu0 0.0
    %1147 = vmatpush1.msra.mxu0 %v879
    %1148 = vmatprep.subr.mxu0 0.0
    %1149 = vmatpush1.msra.mxu0 %v878
    %1150 = vmatprep.subr.mxu0 0.0
    %1151 = vmatpush1.msra.mxu0 %v877
    %1152 = vmatprep.subr.mxu0 0.0
    %1153 = vmatpush1.msra.mxu0 %v876
    %1154 = vmatprep.subr.mxu0 0.0
    %1155 = vmatpush1.msra.mxu0 %v875
    %1156 = vmatprep.subr.mxu0 0.0
    %1157 = vmatpush1.msra.mxu0 %v874
    %1158 = vmatprep.subr.mxu0 0.0
    %1159 = vmatpush1.msra.mxu0 %v873
    %1160 = vmatprep.subr.mxu0 0.0
    %1161 = vmatpush1.msra.mxu0 %v872
    %1162 = vmatprep.subr.mxu0 0.0
    %1163 = vmatpush1.msra.mxu0 %v871
    %1164 = vmatprep.subr.mxu0 0.0
    %1165 = vmatpush1.msra.mxu0 %v870
    %1166 = vmatprep.subr.mxu0 0.0
    %1167 = vmatpush1.msra.mxu0 %v869
    %1168 = vmatprep.subr.mxu0 0.0
    %1169 = vmatpush1.msra.mxu0 %v868
    %1170 = vmatprep.subr.mxu0 0.0
    %1171 = vmatpush2.msra.mxu0 %v899
    %1172 = vmatprep.subr.mxu0 0.0
    %1173 = vmatpush2.msra.mxu0 %v898
    %1174 = vmatprep.subr.mxu0 0.0
    %1175 = vmatpush2.msra.mxu0 %v897
    %1176 = vmatprep.subr.mxu0 0.0
    %1177 = vmatpush2.msra.mxu0 %v896
    %1178 = vmatprep.subr.mxu0 0.0
    %1179 = vmatpush2.msra.mxu0 %v895
    %1180 = vmatprep.subr.mxu0 0.0
    %1181 = vmatpush2.msra.mxu0 %v894
    %1182 = vmatprep.subr.mxu0 0.0
    %1183 = vmatpush2.msra.mxu0 %v893
    %1184 = vmatprep.subr.mxu0 0.0
    %1185 = vmatpush2.msra.mxu0 %v892
    %1186 = vmatprep.subr.mxu0 0.0
    %1187 = vmatpush2.msra.mxu0 %v891
    %1188 = vmatprep.subr.mxu0 0.0
    %1189 = vmatpush2.msra.mxu0 %v890
    %1190 = vmatprep.subr.mxu0 0.0
    %1191 = vmatpush2.msra.mxu0 %v889
    %1192 = vmatprep.subr.mxu0 0.0
    %1193 = vmatpush2.msra.mxu0 %v888
    %1194 = vmatprep.subr.mxu0 0.0
    %1195 = vmatpush2.msra.mxu0 %v887
    %1196 = vmatprep.subr.mxu0 0.0
    %1197 = vmatpush2.msra.mxu0 %v886
    %1198 = vmatprep.subr.mxu0 0.0
    %1199 = vmatpush2.msra.mxu0 %v885
    %1200 = vmatprep.subr.mxu0 0.0
    %1201 = vmatpush2.msra.mxu0 %v884
    %1202 = vmatprep.mubr.f32.mxu0 %v1135
    %1203 = vmatmul.mubr.f32.gmra.mxu0 %v1134
    %v1204 = vpop.f32.mrf.mxu0
    %v1205 = vadd.f32 %v907, %v1204
    %v1206 = vpop.f32.mrf.mxu0
    %1207 = vdwg.mxu0
    %v1208 = vmax.f32 %v1205, 0.0
    %vm1209 = vcmp.gt.s32.totalorder %v901, 2
    %v1210 = vsel %vm1209, 1, 0
    %v1211 = vlaneseq
    %v1212 = vshrl.u32 %v1211, 7
    %v1213 = vsub.s32 0, %v1212
    %v1214 = vrot.slane %v1210, %v1213
    %vm1215 = vcmp.eq.s32.totalorder %v1214, 1
    %v1216 = vsel %vm1215, %v1208, 0.0
    %v1217 = vmax.f32 %v1108, %v1216
    %v1218 = vld [vmem:[#allocation2] sm:$0x3f]
    %v1220 = vcombine.high %v1218, %v1218
    %v1222 = vunpack.c.l.s4 1983009808
    %v1223 = vunpack.c.0.s8 %v1222
    %v1224 = vlaneseq
    %v1225 = vshrl.u32 %v1224, 7
    %v1226 = vsub.s32 %v1223, %v1225
    %v1227 = vrot.slane %v1218, %v1226
    %v1229 = vunpack.c.l.s4 1983009808
    %v1230 = vunpack.c.0.s8 %v1229
    %v1231 = vlaneseq
    %v1232 = vshrl.u32 %v1231, 7
    %v1233 = vsub.s32 %v1230, %v1232
    %v1234 = vrot.slane %v1220, %v1233
    %v1235 = vcombine.high %v1227, %v1227
    %1236 = vrot.lane.b32.xlu0 %v1227, 125
    %v1237 = vpop.permute.xlu0 %1236
    %1238 = vrot.lane.b32.xlu0 %v1235, 125
    %v1239 = vpop.permute.xlu0 %1238
    %1240 = vrot.lane.b32.xlu0 %v1234, 125
    %v1241 = vpop.permute.xlu0 %1240
    %vm1242 = vcmask 1022976
    %v1243 = vsel %vm1242, %v1237, %v1239
    %v1244 = vsel %vm1242, %v1239, %v1241
    %1247 = vmatprep.subr.mxu0 0.0
    %1248 = vmatpush1.msra.mxu0 %v883
    %1249 = vmatprep.subr.mxu0 0.0
    %1250 = vmatpush1.msra.mxu0 %v882
    %1251 = vmatprep.subr.mxu0 0.0
    %1252 = vmatpush1.msra.mxu0 %v881
    %1253 = vmatprep.subr.mxu0 0.0
    %1254 = vmatpush1.msra.mxu0 %v880
    %1255 = vmatprep.subr.mxu0 0.0
    %1256 = vmatpush1.msra.mxu0 %v879
    %1257 = vmatprep.subr.mxu0 0.0
    %1258 = vmatpush1.msra.mxu0 %v878
    %1259 = vmatprep.subr.mxu0 0.0
    %1260 = vmatpush1.msra.mxu0 %v877
    %1261 = vmatprep.subr.mxu0 0.0
    %1262 = vmatpush1.msra.mxu0 %v876
    %1263 = vmatprep.subr.mxu0 0.0
    %1264 = vmatpush1.msra.mxu0 %v875
    %1265 = vmatprep.subr.mxu0 0.0
    %1266 = vmatpush1.msra.mxu0 %v874
    %1267 = vmatprep.subr.mxu0 0.0
    %1268 = vmatpush1.msra.mxu0 %v873
    %1269 = vmatprep.subr.mxu0 0.0
    %1270 = vmatpush1.msra.mxu0 %v872
    %1271 = vmatprep.subr.mxu0 0.0
    %1272 = vmatpush1.msra.mxu0 %v871
    %1273 = vmatprep.subr.mxu0 0.0
    %1274 = vmatpush1.msra.mxu0 %v870
    %1275 = vmatprep.subr.mxu0 0.0
    %1276 = vmatpush1.msra.mxu0 %v869
    %1277 = vmatprep.subr.mxu0 0.0
    %1278 = vmatpush1.msra.mxu0 %v868
    %1279 = vmatprep.subr.mxu0 0.0
    %1280 = vmatpush2.msra.mxu0 %v899
    %1281 = vmatprep.subr.mxu0 0.0
    %1282 = vmatpush2.msra.mxu0 %v898
    %1283 = vmatprep.subr.mxu0 0.0
    %1284 = vmatpush2.msra.mxu0 %v897
    %1285 = vmatprep.subr.mxu0 0.0
    %1286 = vmatpush2.msra.mxu0 %v896
    %1287 = vmatprep.subr.mxu0 0.0
    %1288 = vmatpush2.msra.mxu0 %v895
    %1289 = vmatprep.subr.mxu0 0.0
    %1290 = vmatpush2.msra.mxu0 %v894
    %1291 = vmatprep.subr.mxu0 0.0
    %1292 = vmatpush2.msra.mxu0 %v893
    %1293 = vmatprep.subr.mxu0 0.0
    %1294 = vmatpush2.msra.mxu0 %v892
    %1295 = vmatprep.subr.mxu0 0.0
    %1296 = vmatpush2.msra.mxu0 %v891
    %1297 = vmatprep.subr.mxu0 0.0
    %1298 = vmatpush2.msra.mxu0 %v890
    %1299 = vmatprep.subr.mxu0 0.0
    %1300 = vmatpush2.msra.mxu0 %v889
    %1301 = vmatprep.subr.mxu0 0.0
    %1302 = vmatpush2.msra.mxu0 %v888
    %1303 = vmatprep.subr.mxu0 0.0
    %1304 = vmatpush2.msra.mxu0 %v887
    %1305 = vmatprep.subr.mxu0 0.0
    %1306 = vmatpush2.msra.mxu0 %v886
    %1307 = vmatprep.subr.mxu0 0.0
    %1308 = vmatpush2.msra.mxu0 %v885
    %1309 = vmatprep.subr.mxu0 0.0
    %1310 = vmatpush2.msra.mxu0 %v884
    %1311 = vmatprep.mubr.f32.mxu0 %v1244
    %1312 = vmatmul.mubr.f32.gmra.mxu0 %v1243
    %v1313 = vpop.f32.mrf.mxu0
    %v1314 = vadd.f32 %v907, %v1313
    %v1315 = vpop.f32.mrf.mxu0
    %1316 = vdwg.mxu0
    %v1317 = vmax.f32 %v1314, 0.0
    %vm1318 = vcmp.gt.s32.totalorder %v901, 3
    %v1319 = vsel %vm1318, 1, 0
    %v1320 = vlaneseq
    %v1321 = vshrl.u32 %v1320, 7
    %v1322 = vsub.s32 0, %v1321
    %v1323 = vrot.slane %v1319, %v1322
    %vm1324 = vcmp.eq.s32.totalorder %v1323, 1
    %v1325 = vsel %vm1324, %v1317, 0.0
    %v1326 = vmax.f32 %v1217, %v1325
    %v1327 = vld [vmem:[#allocation2] sm:$0x3f]
    %v1329 = vcombine.high %v1327, %v1327
    %v1331 = vunpack.c.l.s4 1983009808
    %v1332 = vunpack.c.0.s8 %v1331
    %v1333 = vlaneseq
    %v1334 = vshrl.u32 %v1333, 7
    %v1335 = vsub.s32 %v1332, %v1334
    %v1336 = vrot.slane %v1327, %v1335
    %v1338 = vunpack.c.l.s4 1983009808
    %v1339 = vunpack.c.0.s8 %v1338
    %v1340 = vlaneseq
    %v1341 = vshrl.u32 %v1340, 7
    %v1342 = vsub.s32 %v1339, %v1341
    %v1343 = vrot.slane %v1329, %v1342
    %v1344 = vcombine.high %v1336, %v1336
    %1345 = vrot.lane.b32.xlu0 %v1336, 124
    %v1346 = vpop.permute.xlu0 %1345
    %1347 = vrot.lane.b32.xlu0 %v1344, 124
    %v1348 = vpop.permute.xlu0 %1347
    %1349 = vrot.lane.b32.xlu0 %v1343, 124
    %v1350 = vpop.permute.xlu0 %1349
    %vm1351 = vcmask 1014784
    %v1352 = vsel %vm1351, %v1346, %v1348
    %v1353 = vsel %vm1351, %v1348, %v1350
    %1356 = vmatprep.subr.mxu0 0.0
    %1357 = vmatpush1.msra.mxu0 %v883
    %1358 = vmatprep.subr.mxu0 0.0
    %1359 = vmatpush1.msra.mxu0 %v882
    %1360 = vmatprep.subr.mxu0 0.0
    %1361 = vmatpush1.msra.mxu0 %v881
    %1362 = vmatprep.subr.mxu0 0.0
    %1363 = vmatpush1.msra.mxu0 %v880
    %1364 = vmatprep.subr.mxu0 0.0
    %1365 = vmatpush1.msra.mxu0 %v879
    %1366 = vmatprep.subr.mxu0 0.0
    %1367 = vmatpush1.msra.mxu0 %v878
    %1368 = vmatprep.subr.mxu0 0.0
    %1369 = vmatpush1.msra.mxu0 %v877
    %1370 = vmatprep.subr.mxu0 0.0
    %1371 = vmatpush1.msra.mxu0 %v876
    %1372 = vmatprep.subr.mxu0 0.0
    %1373 = vmatpush1.msra.mxu0 %v875
    %1374 = vmatprep.subr.mxu0 0.0
    %1375 = vmatpush1.msra.mxu0 %v874
    %1376 = vmatprep.subr.mxu0 0.0
    %1377 = vmatpush1.msra.mxu0 %v873
    %1378 = vmatprep.subr.mxu0 0.0
    %1379 = vmatpush1.msra.mxu0 %v872
    %1380 = vmatprep.subr.mxu0 0.0
    %1381 = vmatpush1.msra.mxu0 %v871
    %1382 = vmatprep.subr.mxu0 0.0
    %1383 = vmatpush1.msra.mxu0 %v870
    %1384 = vmatprep.subr.mxu0 0.0
    %1385 = vmatpush1.msra.mxu0 %v869
    %1386 = vmatprep.subr.mxu0 0.0
    %1387 = vmatpush1.msra.mxu0 %v868
    %1388 = vmatprep.subr.mxu0 0.0
    %1389 = vmatpush2.msra.mxu0 %v899
    %1390 = vmatprep.subr.mxu0 0.0
    %1391 = vmatpush2.msra.mxu0 %v898
    %1392 = vmatprep.subr.mxu0 0.0
    %1393 = vmatpush2.msra.mxu0 %v897
    %1394 = vmatprep.subr.mxu0 0.0
    %1395 = vmatpush2.msra.mxu0 %v896
    %1396 = vmatprep.subr.mxu0 0.0
    %1397 = vmatpush2.msra.mxu0 %v895
    %1398 = vmatprep.subr.mxu0 0.0
    %1399 = vmatpush2.msra.mxu0 %v894
    %1400 = vmatprep.subr.mxu0 0.0
    %1401 = vmatpush2.msra.mxu0 %v893
    %1402 = vmatprep.subr.mxu0 0.0
    %1403 = vmatpush2.msra.mxu0 %v892
    %1404 = vmatprep.subr.mxu0 0.0
    %1405 = vmatpush2.msra.mxu0 %v891
    %1406 = vmatprep.subr.mxu0 0.0
    %1407 = vmatpush2.msra.mxu0 %v890
    %1408 = vmatprep.subr.mxu0 0.0
    %1409 = vmatpush2.msra.mxu0 %v889
    %1410 = vmatprep.subr.mxu0 0.0
    %1411 = vmatpush2.msra.mxu0 %v888
    %1412 = vmatprep.subr.mxu0 0.0
    %1413 = vmatpush2.msra.mxu0 %v887
    %1414 = vmatprep.subr.mxu0 0.0
    %1415 = vmatpush2.msra.mxu0 %v886
    %1416 = vmatprep.subr.mxu0 0.0
    %1417 = vmatpush2.msra.mxu0 %v885
    %1418 = vmatprep.subr.mxu0 0.0
    %1419 = vmatpush2.msra.mxu0 %v884
    %1420 = vmatprep.mubr.f32.mxu0 %v1353
    %1421 = vmatmul.mubr.f32.gmra.mxu0 %v1352
    %v1422 = vpop.f32.mrf.mxu0
    %v1423 = vadd.f32 %v907, %v1422
    %v1424 = vpop.f32.mrf.mxu0
    %1425 = vdwg.mxu0
    %v1426 = vmax.f32 %v1423, 0.0
    %vm1427 = vcmp.gt.s32.totalorder %v901, 4
    %v1428 = vsel %vm1427, 1, 0
    %v1429 = vlaneseq
    %v1430 = vshrl.u32 %v1429, 7
    %v1431 = vsub.s32 0, %v1430
    %v1432 = vrot.slane %v1428, %v1431
    %vm1433 = vcmp.eq.s32.totalorder %v1432, 1
    %v1434 = vsel %vm1433, %v1426, 0.0
    %v1435 = vmax.f32 %v1326, %v1434
    %v1436 = vld [vmem:[#allocation2] sm:$0x3f]
    %v1438 = vcombine.high %v1436, %v1436
    %v1440 = vunpack.c.l.s4 1983009808
    %v1441 = vunpack.c.0.s8 %v1440
    %v1442 = vlaneseq
    %v1443 = vshrl.u32 %v1442, 7
    %v1444 = vsub.s32 %v1441, %v1443
    %v1445 = vrot.slane %v1436, %v1444
    %v1447 = vunpack.c.l.s4 1983009808
    %v1448 = vunpack.c.0.s8 %v1447
    %v1449 = vlaneseq
    %v1450 = vshrl.u32 %v1449, 7
    %v1451 = vsub.s32 %v1448, %v1450
    %v1452 = vrot.slane %v1438, %v1451
    %v1453 = vcombine.high %v1445, %v1445
    %1454 = vrot.lane.b32.xlu0 %v1445, 123
    %v1455 = vpop.permute.xlu0 %1454
    %1456 = vrot.lane.b32.xlu0 %v1453, 123
    %v1457 = vpop.permute.xlu0 %1456
    %1458 = vrot.lane.b32.xlu0 %v1452, 123
    %v1459 = vpop.permute.xlu0 %1458
    %vm1460 = vcmask 1006592
    %v1461 = vsel %vm1460, %v1455, %v1457
    %v1462 = vsel %vm1460, %v1457, %v1459
    %1465 = vmatprep.subr.mxu0 0.0
    %1466 = vmatpush1.msra.mxu0 %v883
    %1467 = vmatprep.subr.mxu0 0.0
    %1468 = vmatpush1.msra.mxu0 %v882
    %1469 = vmatprep.subr.mxu0 0.0
    %1470 = vmatpush1.msra.mxu0 %v881
    %1471 = vmatprep.subr.mxu0 0.0
    %1472 = vmatpush1.msra.mxu0 %v880
    %1473 = vmatprep.subr.mxu0 0.0
    %1474 = vmatpush1.msra.mxu0 %v879
    %1475 = vmatprep.subr.mxu0 0.0
    %1476 = vmatpush1.msra.mxu0 %v878
    %1477 = vmatprep.subr.mxu0 0.0
    %1478 = vmatpush1.msra.mxu0 %v877
    %1479 = vmatprep.subr.mxu0 0.0
    %1480 = vmatpush1.msra.mxu0 %v876
    %1481 = vmatprep.subr.mxu0 0.0
    %1482 = vmatpush1.msra.mxu0 %v875
    %1483 = vmatprep.subr.mxu0 0.0
    %1484 = vmatpush1.msra.mxu0 %v874
    %1485 = vmatprep.subr.mxu0 0.0
    %1486 = vmatpush1.msra.mxu0 %v873
    %1487 = vmatprep.subr.mxu0 0.0
    %1488 = vmatpush1.msra.mxu0 %v872
    %1489 = vmatprep.subr.mxu0 0.0
    %1490 = vmatpush1.msra.mxu0 %v871
    %1491 = vmatprep.subr.mxu0 0.0
    %1492 = vmatpush1.msra.mxu0 %v870
    %1493 = vmatprep.subr.mxu0 0.0
    %1494 = vmatpush1.msra.mxu0 %v869
    %1495 = vmatprep.subr.mxu0 0.0
    %1496 = vmatpush1.msra.mxu0 %v868
    %1497 = vmatprep.subr.mxu0 0.0
    %1498 = vmatpush2.msra.mxu0 %v899
    %1499 = vmatprep.subr.mxu0 0.0
    %1500 = vmatpush2.msra.mxu0 %v898
    %1501 = vmatprep.subr.mxu0 0.0
    %1502 = vmatpush2.msra.mxu0 %v897
    %1503 = vmatprep.subr.mxu0 0.0
    %1504 = vmatpush2.msra.mxu0 %v896
    %1505 = vmatprep.subr.mxu0 0.0
    %1506 = vmatpush2.msra.mxu0 %v895
    %1507 = vmatprep.subr.mxu0 0.0
    %1508 = vmatpush2.msra.mxu0 %v894
    %1509 = vmatprep.subr.mxu0 0.0
    %1510 = vmatpush2.msra.mxu0 %v893
    %1511 = vmatprep.subr.mxu0 0.0
    %1512 = vmatpush2.msra.mxu0 %v892
    %1513 = vmatprep.subr.mxu0 0.0
    %1514 = vmatpush2.msra.mxu0 %v891
    %1515 = vmatprep.subr.mxu0 0.0
    %1516 = vmatpush2.msra.mxu0 %v890
    %1517 = vmatprep.subr.mxu0 0.0
    %1518 = vmatpush2.msra.mxu0 %v889
    %1519 = vmatprep.subr.mxu0 0.0
    %1520 = vmatpush2.msra.mxu0 %v888
    %1521 = vmatprep.subr.mxu0 0.0
    %1522 = vmatpush2.msra.mxu0 %v887
    %1523 = vmatprep.subr.mxu0 0.0
    %1524 = vmatpush2.msra.mxu0 %v886
    %1525 = vmatprep.subr.mxu0 0.0
    %1526 = vmatpush2.msra.mxu0 %v885
    %1527 = vmatprep.subr.mxu0 0.0
    %1528 = vmatpush2.msra.mxu0 %v884
    %1529 = vmatprep.mubr.f32.mxu0 %v1462
    %1530 = vmatmul.mubr.f32.gmra.mxu0 %v1461
    %v1531 = vpop.f32.mrf.mxu0
    %v1532 = vadd.f32 %v907, %v1531
    %v1533 = vpop.f32.mrf.mxu0
    %1534 = vdwg.mxu0
    %v1535 = vmax.f32 %v1532, 0.0
    %vm1536 = vcmp.gt.s32.totalorder %v901, 5
    %v1537 = vsel %vm1536, 1, 0
    %v1538 = vlaneseq
    %v1539 = vshrl.u32 %v1538, 7
    %v1540 = vsub.s32 0, %v1539
    %v1541 = vrot.slane %v1537, %v1540
    %vm1542 = vcmp.eq.s32.totalorder %v1541, 1
    %v1543 = vsel %vm1542, %v1535, 0.0
    %v1544 = vmax.f32 %v1435, %v1543
    %v1545 = vld [vmem:[#allocation2] sm:$0x3f]
    %v1547 = vcombine.high %v1545, %v1545
    %v1549 = vunpack.c.l.s4 1983009808
    %v1550 = vunpack.c.0.s8 %v1549
    %v1551 = vlaneseq
    %v1552 = vshrl.u32 %v1551, 7
    %v1553 = vsub.s32 %v1550, %v1552
    %v1554 = vrot.slane %v1545, %v1553
    %v1556 = vunpack.c.l.s4 1983009808
    %v1557 = vunpack.c.0.s8 %v1556
    %v1558 = vlaneseq
    %v1559 = vshrl.u32 %v1558, 7
    %v1560 = vsub.s32 %v1557, %v1559
    %v1561 = vrot.slane %v1547, %v1560
    %v1562 = vcombine.high %v1554, %v1554
    %1563 = vrot.lane.b32.xlu0 %v1554, 122
    %v1564 = vpop.permute.xlu0 %1563
    %1565 = vrot.lane.b32.xlu0 %v1562, 122
    %v1566 = vpop.permute.xlu0 %1565
    %1567 = vrot.lane.b32.xlu0 %v1561, 122
    %v1568 = vpop.permute.xlu0 %1567
    %vm1569 = vcmask 998400
    %v1570 = vsel %vm1569, %v1564, %v1566
    %v1571 = vsel %vm1569, %v1566, %v1568
    %1574 = vmatprep.subr.mxu0 0.0
    %1575 = vmatpush1.msra.mxu0 %v883
    %1576 = vmatprep.subr.mxu0 0.0
    %1577 = vmatpush1.msra.mxu0 %v882
    %1578 = vmatprep.subr.mxu0 0.0
    %1579 = vmatpush1.msra.mxu0 %v881
    %1580 = vmatprep.subr.mxu0 0.0
    %1581 = vmatpush1.msra.mxu0 %v880
    %1582 = vmatprep.subr.mxu0 0.0
    %1583 = vmatpush1.msra.mxu0 %v879
    %1584 = vmatprep.subr.mxu0 0.0
    %1585 = vmatpush1.msra.mxu0 %v878
    %1586 = vmatprep.subr.mxu0 0.0
    %1587 = vmatpush1.msra.mxu0 %v877
    %1588 = vmatprep.subr.mxu0 0.0
    %1589 = vmatpush1.msra.mxu0 %v876
    %1590 = vmatprep.subr.mxu0 0.0
    %1591 = vmatpush1.msra.mxu0 %v875
    %1592 = vmatprep.subr.mxu0 0.0
    %1593 = vmatpush1.msra.mxu0 %v874
    %1594 = vmatprep.subr.mxu0 0.0
    %1595 = vmatpush1.msra.mxu0 %v873
    %1596 = vmatprep.subr.mxu0 0.0
    %1597 = vmatpush1.msra.mxu0 %v872
    %1598 = vmatprep.subr.mxu0 0.0
    %1599 = vmatpush1.msra.mxu0 %v871
    %1600 = vmatprep.subr.mxu0 0.0
    %1601 = vmatpush1.msra.mxu0 %v870
    %1602 = vmatprep.subr.mxu0 0.0
    %1603 = vmatpush1.msra.mxu0 %v869
    %1604 = vmatprep.subr.mxu0 0.0
    %1605 = vmatpush1.msra.mxu0 %v868
    %1606 = vmatprep.subr.mxu0 0.0
    %1607 = vmatpush2.msra.mxu0 %v899
    %1608 = vmatprep.subr.mxu0 0.0
    %1609 = vmatpush2.msra.mxu0 %v898
    %1610 = vmatprep.subr.mxu0 0.0
    %1611 = vmatpush2.msra.mxu0 %v897
    %1612 = vmatprep.subr.mxu0 0.0
    %1613 = vmatpush2.msra.mxu0 %v896
    %1614 = vmatprep.subr.mxu0 0.0
    %1615 = vmatpush2.msra.mxu0 %v895
    %1616 = vmatprep.subr.mxu0 0.0
    %1617 = vmatpush2.msra.mxu0 %v894
    %1618 = vmatprep.subr.mxu0 0.0
    %1619 = vmatpush2.msra.mxu0 %v893
    %1620 = vmatprep.subr.mxu0 0.0
    %1621 = vmatpush2.msra.mxu0 %v892
    %1622 = vmatprep.subr.mxu0 0.0
    %1623 = vmatpush2.msra.mxu0 %v891
    %1624 = vmatprep.subr.mxu0 0.0
    %1625 = vmatpush2.msra.mxu0 %v890
    %1626 = vmatprep.subr.mxu0 0.0
    %1627 = vmatpush2.msra.mxu0 %v889
    %1628 = vmatprep.subr.mxu0 0.0
    %1629 = vmatpush2.msra.mxu0 %v888
    %1630 = vmatprep.subr.mxu0 0.0
    %1631 = vmatpush2.msra.mxu0 %v887
    %1632 = vmatprep.subr.mxu0 0.0
    %1633 = vmatpush2.msra.mxu0 %v886
    %1634 = vmatprep.subr.mxu0 0.0
    %1635 = vmatpush2.msra.mxu0 %v885
    %1636 = vmatprep.subr.mxu0 0.0
    %1637 = vmatpush2.msra.mxu0 %v884
    %1638 = vmatprep.mubr.f32.mxu0 %v1571
    %1639 = vmatmul.mubr.f32.gmra.mxu0 %v1570
    %v1640 = vpop.f32.mrf.mxu0
    %v1641 = vadd.f32 %v907, %v1640
    %v1642 = vpop.f32.mrf.mxu0
    %1643 = vdwg.mxu0
    %v1644 = vmax.f32 %v1641, 0.0
    %vm1645 = vcmp.gt.s32.totalorder %v901, 6
    %v1646 = vsel %vm1645, 1, 0
    %v1647 = vlaneseq
    %v1648 = vshrl.u32 %v1647, 7
    %v1649 = vsub.s32 0, %v1648
    %v1650 = vrot.slane %v1646, %v1649
    %vm1651 = vcmp.eq.s32.totalorder %v1650, 1
    %v1652 = vsel %vm1651, %v1644, 0.0
    %v1653 = vmax.f32 %v1544, %v1652
    %v1654 = vld [vmem:[#allocation2] sm:$0x3f]
    %v1656 = vcombine.high %v1654, %v1654
    %v1658 = vunpack.c.l.s4 1983009808
    %v1659 = vunpack.c.0.s8 %v1658
    %v1660 = vlaneseq
    %v1661 = vshrl.u32 %v1660, 7
    %v1662 = vsub.s32 %v1659, %v1661
    %v1663 = vrot.slane %v1654, %v1662
    %v1665 = vunpack.c.l.s4 1983009808
    %v1666 = vunpack.c.0.s8 %v1665
    %v1667 = vlaneseq
    %v1668 = vshrl.u32 %v1667, 7
    %v1669 = vsub.s32 %v1666, %v1668
    %v1670 = vrot.slane %v1656, %v1669
    %v1671 = vcombine.high %v1663, %v1663
    %1672 = vrot.lane.b32.xlu0 %v1663, 121
    %v1673 = vpop.permute.xlu0 %1672
    %1674 = vrot.lane.b32.xlu0 %v1671, 121
    %v1675 = vpop.permute.xlu0 %1674
    %1676 = vrot.lane.b32.xlu0 %v1670, 121
    %v1677 = vpop.permute.xlu0 %1676
    %vm1678 = vcmask 990208
    %v1679 = vsel %vm1678, %v1673, %v1675
    %v1680 = vsel %vm1678, %v1675, %v1677
    %1683 = vmatprep.subr.mxu0 0.0
    %1684 = vmatpush1.msra.mxu0 %v883
    %1685 = vmatprep.subr.mxu0 0.0
    %1686 = vmatpush1.msra.mxu0 %v882
    %1687 = vmatprep.subr.mxu0 0.0
    %1688 = vmatpush1.msra.mxu0 %v881
    %1689 = vmatprep.subr.mxu0 0.0
    %1690 = vmatpush1.msra.mxu0 %v880
    %1691 = vmatprep.subr.mxu0 0.0
    %1692 = vmatpush1.msra.mxu0 %v879
    %1693 = vmatprep.subr.mxu0 0.0
    %1694 = vmatpush1.msra.mxu0 %v878
    %1695 = vmatprep.subr.mxu0 0.0
    %1696 = vmatpush1.msra.mxu0 %v877
    %1697 = vmatprep.subr.mxu0 0.0
    %1698 = vmatpush1.msra.mxu0 %v876
    %1699 = vmatprep.subr.mxu0 0.0
    %1700 = vmatpush1.msra.mxu0 %v875
    %1701 = vmatprep.subr.mxu0 0.0
    %1702 = vmatpush1.msra.mxu0 %v874
    %1703 = vmatprep.subr.mxu0 0.0
    %1704 = vmatpush1.msra.mxu0 %v873
    %1705 = vmatprep.subr.mxu0 0.0
    %1706 = vmatpush1.msra.mxu0 %v872
    %1707 = vmatprep.subr.mxu0 0.0
    %1708 = vmatpush1.msra.mxu0 %v871
    %1709 = vmatprep.subr.mxu0 0.0
    %1710 = vmatpush1.msra.mxu0 %v870
    %1711 = vmatprep.subr.mxu0 0.0
    %1712 = vmatpush1.msra.mxu0 %v869
    %1713 = vmatprep.subr.mxu0 0.0
    %1714 = vmatpush1.msra.mxu0 %v868
    %1715 = vmatprep.subr.mxu0 0.0
    %1716 = vmatpush2.msra.mxu0 %v899
    %1717 = vmatprep.subr.mxu0 0.0
    %1718 = vmatpush2.msra.mxu0 %v898
    %1719 = vmatprep.subr.mxu0 0.0
    %1720 = vmatpush2.msra.mxu0 %v897
    %1721 = vmatprep.subr.mxu0 0.0
    %1722 = vmatpush2.msra.mxu0 %v896
    %1723 = vmatprep.subr.mxu0 0.0
    %1724 = vmatpush2.msra.mxu0 %v895
    %1725 = vmatprep.subr.mxu0 0.0
    %1726 = vmatpush2.msra.mxu0 %v894
    %1727 = vmatprep.subr.mxu0 0.0
    %1728 = vmatpush2.msra.mxu0 %v893
    %1729 = vmatprep.subr.mxu0 0.0
    %1730 = vmatpush2.msra.mxu0 %v892
    %1731 = vmatprep.subr.mxu0 0.0
    %1732 = vmatpush2.msra.mxu0 %v891
    %1733 = vmatprep.subr.mxu0 0.0
    %1734 = vmatpush2.msra.mxu0 %v890
    %1735 = vmatprep.subr.mxu0 0.0
    %1736 = vmatpush2.msra.mxu0 %v889
    %1737 = vmatprep.subr.mxu0 0.0
    %1738 = vmatpush2.msra.mxu0 %v888
    %1739 = vmatprep.subr.mxu0 0.0
    %1740 = vmatpush2.msra.mxu0 %v887
    %1741 = vmatprep.subr.mxu0 0.0
    %1742 = vmatpush2.msra.mxu0 %v886
    %1743 = vmatprep.subr.mxu0 0.0
    %1744 = vmatpush2.msra.mxu0 %v885
    %1745 = vmatprep.subr.mxu0 0.0
    %1746 = vmatpush2.msra.mxu0 %v884
    %1747 = vmatprep.mubr.f32.mxu0 %v1680
    %1748 = vmatmul.mubr.f32.gmra.mxu0 %v1679
    %v1749 = vpop.f32.mrf.mxu0
    %v1750 = vadd.f32 %v907, %v1749
    %v1751 = vpop.f32.mrf.mxu0
    %1752 = vdwg.mxu0
    %v1753 = vmax.f32 %v1750, 0.0
    %vm1754 = vcmp.gt.s32.totalorder %v901, 7
    %v1755 = vsel %vm1754, 1, 0
    %v1756 = vlaneseq
    %v1757 = vshrl.u32 %v1756, 7
    %v1758 = vsub.s32 0, %v1757
    %v1759 = vrot.slane %v1755, %v1758
    %vm1760 = vcmp.eq.s32.totalorder %v1759, 1
    %v1761 = vsel %vm1760, %v1753, 0.0
    %v1762 = vmax.f32 %v1653, %v1761
    %v1763 = vld [vmem:[#allocation2] sm:$0x3f]
    %v1765 = vcombine.high %v1763, %v1763
    %v1767 = vunpack.c.l.s4 1983009808
    %v1768 = vunpack.c.0.s8 %v1767
    %v1769 = vlaneseq
    %v1770 = vshrl.u32 %v1769, 7
    %v1771 = vsub.s32 %v1768, %v1770
    %v1772 = vrot.slane %v1763, %v1771
    %v1774 = vunpack.c.l.s4 1983009808
    %v1775 = vunpack.c.0.s8 %v1774
    %v1776 = vlaneseq
    %v1777 = vshrl.u32 %v1776, 7
    %v1778 = vsub.s32 %v1775, %v1777
    %v1779 = vrot.slane %v1765, %v1778
    %v1780 = vcombine.high %v1772, %v1772
    %1781 = vrot.lane.b32.xlu0 %v1772, 120
    %v1782 = vpop.permute.xlu0 %1781
    %1783 = vrot.lane.b32.xlu0 %v1780, 120
    %v1784 = vpop.permute.xlu0 %1783
    %1785 = vrot.lane.b32.xlu0 %v1779, 120
    %v1786 = vpop.permute.xlu0 %1785
    %vm1787 = vcmask 982016
    %v1788 = vsel %vm1787, %v1782, %v1784
    %v1789 = vsel %vm1787, %v1784, %v1786
    %1792 = vmatprep.subr.mxu0 0.0
    %1793 = vmatpush1.msra.mxu0 %v883
    %1794 = vmatprep.subr.mxu0 0.0
    %1795 = vmatpush1.msra.mxu0 %v882
    %1796 = vmatprep.subr.mxu0 0.0
    %1797 = vmatpush1.msra.mxu0 %v881
    %1798 = vmatprep.subr.mxu0 0.0
    %1799 = vmatpush1.msra.mxu0 %v880
    %1800 = vmatprep.subr.mxu0 0.0
    %1801 = vmatpush1.msra.mxu0 %v879
    %1802 = vmatprep.subr.mxu0 0.0
    %1803 = vmatpush1.msra.mxu0 %v878
    %1804 = vmatprep.subr.mxu0 0.0
    %1805 = vmatpush1.msra.mxu0 %v877
    %1806 = vmatprep.subr.mxu0 0.0
    %1807 = vmatpush1.msra.mxu0 %v876
    %1808 = vmatprep.subr.mxu0 0.0
    %1809 = vmatpush1.msra.mxu0 %v875
    %1810 = vmatprep.subr.mxu0 0.0
    %1811 = vmatpush1.msra.mxu0 %v874
    %1812 = vmatprep.subr.mxu0 0.0
    %1813 = vmatpush1.msra.mxu0 %v873
    %1814 = vmatprep.subr.mxu0 0.0
    %1815 = vmatpush1.msra.mxu0 %v872
    %1816 = vmatprep.subr.mxu0 0.0
    %1817 = vmatpush1.msra.mxu0 %v871
    %1818 = vmatprep.subr.mxu0 0.0
    %1819 = vmatpush1.msra.mxu0 %v870
    %1820 = vmatprep.subr.mxu0 0.0
    %1821 = vmatpush1.msra.mxu0 %v869
    %1822 = vmatprep.subr.mxu0 0.0
    %1823 = vmatpush1.msra.mxu0 %v868
    %1824 = vmatprep.subr.mxu0 0.0
    %1825 = vmatpush2.msra.mxu0 %v899
    %1826 = vmatprep.subr.mxu0 0.0
    %1827 = vmatpush2.msra.mxu0 %v898
    %1828 = vmatprep.subr.mxu0 0.0
    %1829 = vmatpush2.msra.mxu0 %v897
    %1830 = vmatprep.subr.mxu0 0.0
    %1831 = vmatpush2.msra.mxu0 %v896
    %1832 = vmatprep.subr.mxu0 0.0
    %1833 = vmatpush2.msra.mxu0 %v895
    %1834 = vmatprep.subr.mxu0 0.0
    %1835 = vmatpush2.msra.mxu0 %v894
    %1836 = vmatprep.subr.mxu0 0.0
    %1837 = vmatpush2.msra.mxu0 %v893
    %1838 = vmatprep.subr.mxu0 0.0
    %1839 = vmatpush2.msra.mxu0 %v892
    %1840 = vmatprep.subr.mxu0 0.0
    %1841 = vmatpush2.msra.mxu0 %v891
    %1842 = vmatprep.subr.mxu0 0.0
    %1843 = vmatpush2.msra.mxu0 %v890
    %1844 = vmatprep.subr.mxu0 0.0
    %1845 = vmatpush2.msra.mxu0 %v889
    %1846 = vmatprep.subr.mxu0 0.0
    %1847 = vmatpush2.msra.mxu0 %v888
    %1848 = vmatprep.subr.mxu0 0.0
    %1849 = vmatpush2.msra.mxu0 %v887
    %1850 = vmatprep.subr.mxu0 0.0
    %1851 = vmatpush2.msra.mxu0 %v886
    %1852 = vmatprep.subr.mxu0 0.0
    %1853 = vmatpush2.msra.mxu0 %v885
    %1854 = vmatprep.subr.mxu0 0.0
    %1855 = vmatpush2.msra.mxu0 %v884
    %1856 = vmatprep.mubr.f32.mxu0 %v1789
    %1857 = vmatmul.mubr.f32.gmra.mxu0 %v1788
    %v1858 = vpop.f32.mrf.mxu0
    %v1859 = vadd.f32 %v907, %v1858
    %v1860 = vpop.f32.mrf.mxu0
    %1861 = vdwg.mxu0
    %v1862 = vmax.f32 %v1859, 0.0
    %vm1863 = vcmp.gt.s32.totalorder %v901, 8
    %v1864 = vsel %vm1863, 1, 0
    %v1865 = vlaneseq
    %v1866 = vshrl.u32 %v1865, 7
    %v1867 = vsub.s32 0, %v1866
    %v1868 = vrot.slane %v1864, %v1867
    %vm1869 = vcmp.eq.s32.totalorder %v1868, 1
    %v1870 = vsel %vm1869, %v1862, 0.0
    %v1871 = vmax.f32 %v1762, %v1870
    %v1872 = vld [vmem:[#allocation2] sm:$0x3f]
    %v1874 = vcombine.high %v1872, %v1872
    %v1876 = vunpack.c.l.s4 1983009808
    %v1877 = vunpack.c.0.s8 %v1876
    %v1878 = vlaneseq
    %v1879 = vshrl.u32 %v1878, 7
    %v1880 = vsub.s32 %v1877, %v1879
    %v1881 = vrot.slane %v1872, %v1880
    %v1883 = vunpack.c.l.s4 1983009808
    %v1884 = vunpack.c.0.s8 %v1883
    %v1885 = vlaneseq
    %v1886 = vshrl.u32 %v1885, 7
    %v1887 = vsub.s32 %v1884, %v1886
    %v1888 = vrot.slane %v1874, %v1887
    %v1889 = vcombine.high %v1881, %v1881
    %1890 = vrot.lane.b32.xlu0 %v1881, 119
    %v1891 = vpop.permute.xlu0 %1890
    %1892 = vrot.lane.b32.xlu0 %v1889, 119
    %v1893 = vpop.permute.xlu0 %1892
    %1894 = vrot.lane.b32.xlu0 %v1888, 119
    %v1895 = vpop.permute.xlu0 %1894
    %vm1896 = vcmask 973824
    %v1897 = vsel %vm1896, %v1891, %v1893
    %v1898 = vsel %vm1896, %v1893, %v1895
    %1901 = vmatprep.subr.mxu0 0.0
    %1902 = vmatpush1.msra.mxu0 %v883
    %1903 = vmatprep.subr.mxu0 0.0
    %1904 = vmatpush1.msra.mxu0 %v882
    %1905 = vmatprep.subr.mxu0 0.0
    %1906 = vmatpush1.msra.mxu0 %v881
    %1907 = vmatprep.subr.mxu0 0.0
    %1908 = vmatpush1.msra.mxu0 %v880
    %1909 = vmatprep.subr.mxu0 0.0
    %1910 = vmatpush1.msra.mxu0 %v879
    %1911 = vmatprep.subr.mxu0 0.0
    %1912 = vmatpush1.msra.mxu0 %v878
    %1913 = vmatprep.subr.mxu0 0.0
    %1914 = vmatpush1.msra.mxu0 %v877
    %1915 = vmatprep.subr.mxu0 0.0
    %1916 = vmatpush1.msra.mxu0 %v876
    %1917 = vmatprep.subr.mxu0 0.0
    %1918 = vmatpush1.msra.mxu0 %v875
    %1919 = vmatprep.subr.mxu0 0.0
    %1920 = vmatpush1.msra.mxu0 %v874
    %1921 = vmatprep.subr.mxu0 0.0
    %1922 = vmatpush1.msra.mxu0 %v873
    %1923 = vmatprep.subr.mxu0 0.0
    %1924 = vmatpush1.msra.mxu0 %v872
    %1925 = vmatprep.subr.mxu0 0.0
    %1926 = vmatpush1.msra.mxu0 %v871
    %1927 = vmatprep.subr.mxu0 0.0
    %1928 = vmatpush1.msra.mxu0 %v870
    %1929 = vmatprep.subr.mxu0 0.0
    %1930 = vmatpush1.msra.mxu0 %v869
    %1931 = vmatprep.subr.mxu0 0.0
    %1932 = vmatpush1.msra.mxu0 %v868
    %1933 = vmatprep.subr.mxu0 0.0
    %1934 = vmatpush2.msra.mxu0 %v899
    %1935 = vmatprep.subr.mxu0 0.0
    %1936 = vmatpush2.msra.mxu0 %v898
    %1937 = vmatprep.subr.mxu0 0.0
    %1938 = vmatpush2.msra.mxu0 %v897
    %1939 = vmatprep.subr.mxu0 0.0
    %1940 = vmatpush2.msra.mxu0 %v896
    %1941 = vmatprep.subr.mxu0 0.0
    %1942 = vmatpush2.msra.mxu0 %v895
    %1943 = vmatprep.subr.mxu0 0.0
    %1944 = vmatpush2.msra.mxu0 %v894
    %1945 = vmatprep.subr.mxu0 0.0
    %1946 = vmatpush2.msra.mxu0 %v893
    %1947 = vmatprep.subr.mxu0 0.0
    %1948 = vmatpush2.msra.mxu0 %v892
    %1949 = vmatprep.subr.mxu0 0.0
    %1950 = vmatpush2.msra.mxu0 %v891
    %1951 = vmatprep.subr.mxu0 0.0
    %1952 = vmatpush2.msra.mxu0 %v890
    %1953 = vmatprep.subr.mxu0 0.0
    %1954 = vmatpush2.msra.mxu0 %v889
    %1955 = vmatprep.subr.mxu0 0.0
    %1956 = vmatpush2.msra.mxu0 %v888
    %1957 = vmatprep.subr.mxu0 0.0
    %1958 = vmatpush2.msra.mxu0 %v887
    %1959 = vmatprep.subr.mxu0 0.0
    %1960 = vmatpush2.msra.mxu0 %v886
    %1961 = vmatprep.subr.mxu0 0.0
    %1962 = vmatpush2.msra.mxu0 %v885
    %1963 = vmatprep.subr.mxu0 0.0
    %1964 = vmatpush2.msra.mxu0 %v884
    %1965 = vmatprep.mubr.f32.mxu0 %v1898
    %1966 = vmatmul.mubr.f32.gmra.mxu0 %v1897
    %v1967 = vpop.f32.mrf.mxu0
    %v1968 = vadd.f32 %v907, %v1967
    %v1969 = vpop.f32.mrf.mxu0
    %1970 = vdwg.mxu0
    %v1971 = vmax.f32 %v1968, 0.0
    %vm1972 = vcmp.gt.s32.totalorder %v901, 9
    %v1973 = vsel %vm1972, 1, 0
    %v1974 = vlaneseq
    %v1975 = vshrl.u32 %v1974, 7
    %v1976 = vsub.s32 0, %v1975
    %v1977 = vrot.slane %v1973, %v1976
    %vm1978 = vcmp.eq.s32.totalorder %v1977, 1
    %v1979 = vsel %vm1978, %v1971, 0.0
    %v1980 = vmax.f32 %v1871, %v1979
    %v1981 = vld [vmem:[#allocation2] sm:$0x3f]
    %v1983 = vcombine.high %v1981, %v1981
    %v1985 = vunpack.c.l.s4 1983009808
    %v1986 = vunpack.c.0.s8 %v1985
    %v1987 = vlaneseq
    %v1988 = vshrl.u32 %v1987, 7
    %v1989 = vsub.s32 %v1986, %v1988
    %v1990 = vrot.slane %v1981, %v1989
    %v1992 = vunpack.c.l.s4 1983009808
    %v1993 = vunpack.c.0.s8 %v1992
    %v1994 = vlaneseq
    %v1995 = vshrl.u32 %v1994, 7
    %v1996 = vsub.s32 %v1993, %v1995
    %v1997 = vrot.slane %v1983, %v1996
    %v1998 = vcombine.high %v1990, %v1990
    %1999 = vrot.lane.b32.xlu0 %v1990, 118
    %v2000 = vpop.permute.xlu0 %1999
    %2001 = vrot.lane.b32.xlu0 %v1998, 118
    %v2002 = vpop.permute.xlu0 %2001
    %2003 = vrot.lane.b32.xlu0 %v1997, 118
    %v2004 = vpop.permute.xlu0 %2003
    %vm2005 = vcmask 965632
    %v2006 = vsel %vm2005, %v2000, %v2002
    %v2007 = vsel %vm2005, %v2002, %v2004
    %2010 = vmatprep.subr.mxu0 0.0
    %2011 = vmatpush1.msra.mxu0 %v883
    %2012 = vmatprep.subr.mxu0 0.0
    %2013 = vmatpush1.msra.mxu0 %v882
    %2014 = vmatprep.subr.mxu0 0.0
    %2015 = vmatpush1.msra.mxu0 %v881
    %2016 = vmatprep.subr.mxu0 0.0
    %2017 = vmatpush1.msra.mxu0 %v880
    %2018 = vmatprep.subr.mxu0 0.0
    %2019 = vmatpush1.msra.mxu0 %v879
    %2020 = vmatprep.subr.mxu0 0.0
    %2021 = vmatpush1.msra.mxu0 %v878
    %2022 = vmatprep.subr.mxu0 0.0
    %2023 = vmatpush1.msra.mxu0 %v877
    %2024 = vmatprep.subr.mxu0 0.0
    %2025 = vmatpush1.msra.mxu0 %v876
    %2026 = vmatprep.subr.mxu0 0.0
    %2027 = vmatpush1.msra.mxu0 %v875
    %2028 = vmatprep.subr.mxu0 0.0
    %2029 = vmatpush1.msra.mxu0 %v874
    %2030 = vmatprep.subr.mxu0 0.0
    %2031 = vmatpush1.msra.mxu0 %v873
    %2032 = vmatprep.subr.mxu0 0.0
    %2033 = vmatpush1.msra.mxu0 %v872
    %2034 = vmatprep.subr.mxu0 0.0
    %2035 = vmatpush1.msra.mxu0 %v871
    %2036 = vmatprep.subr.mxu0 0.0
    %2037 = vmatpush1.msra.mxu0 %v870
    %2038 = vmatprep.subr.mxu0 0.0
    %2039 = vmatpush1.msra.mxu0 %v869
    %2040 = vmatprep.subr.mxu0 0.0
    %2041 = vmatpush1.msra.mxu0 %v868
    %2042 = vmatprep.subr.mxu0 0.0
    %2043 = vmatpush2.msra.mxu0 %v899
    %2044 = vmatprep.subr.mxu0 0.0
    %2045 = vmatpush2.msra.mxu0 %v898
    %2046 = vmatprep.subr.mxu0 0.0
    %2047 = vmatpush2.msra.mxu0 %v897
    %2048 = vmatprep.subr.mxu0 0.0
    %2049 = vmatpush2.msra.mxu0 %v896
    %2050 = vmatprep.subr.mxu0 0.0
    %2051 = vmatpush2.msra.mxu0 %v895
    %2052 = vmatprep.subr.mxu0 0.0
    %2053 = vmatpush2.msra.mxu0 %v894
    %2054 = vmatprep.subr.mxu0 0.0
    %2055 = vmatpush2.msra.mxu0 %v893
    %2056 = vmatprep.subr.mxu0 0.0
    %2057 = vmatpush2.msra.mxu0 %v892
    %2058 = vmatprep.subr.mxu0 0.0
    %2059 = vmatpush2.msra.mxu0 %v891
    %2060 = vmatprep.subr.mxu0 0.0
    %2061 = vmatpush2.msra.mxu0 %v890
    %2062 = vmatprep.subr.mxu0 0.0
    %2063 = vmatpush2.msra.mxu0 %v889
    %2064 = vmatprep.subr.mxu0 0.0
    %2065 = vmatpush2.msra.mxu0 %v888
    %2066 = vmatprep.subr.mxu0 0.0
    %2067 = vmatpush2.msra.mxu0 %v887
    %2068 = vmatprep.subr.mxu0 0.0
    %2069 = vmatpush2.msra.mxu0 %v886
    %2070 = vmatprep.subr.mxu0 0.0
    %2071 = vmatpush2.msra.mxu0 %v885
    %2072 = vmatprep.subr.mxu0 0.0
    %2073 = vmatpush2.msra.mxu0 %v884
    %2074 = vmatprep.mubr.f32.mxu0 %v2007
    %2075 = vmatmul.mubr.f32.gmra.mxu0 %v2006
    %v2076 = vpop.f32.mrf.mxu0
    %v2077 = vadd.f32 %v907, %v2076
    %v2078 = vpop.f32.mrf.mxu0
    %2079 = vdwg.mxu0
    %v2080 = vmax.f32 %v2077, 0.0
    %vm2081 = vcmp.gt.s32.totalorder %v901, 10
    %v2082 = vsel %vm2081, 1, 0
    %v2083 = vlaneseq
    %v2084 = vshrl.u32 %v2083, 7
    %v2085 = vsub.s32 0, %v2084
    %v2086 = vrot.slane %v2082, %v2085
    %vm2087 = vcmp.eq.s32.totalorder %v2086, 1
    %v2088 = vsel %vm2087, %v2080, 0.0
    %v2089 = vmax.f32 %v1980, %v2088
    %v2090 = vld [vmem:[#allocation2] sm:$0x3f]
    %v2092 = vcombine.high %v2090, %v2090
    %v2094 = vunpack.c.l.s4 1983009808
    %v2095 = vunpack.c.0.s8 %v2094
    %v2096 = vlaneseq
    %v2097 = vshrl.u32 %v2096, 7
    %v2098 = vsub.s32 %v2095, %v2097
    %v2099 = vrot.slane %v2090, %v2098
    %v2101 = vunpack.c.l.s4 1983009808
    %v2102 = vunpack.c.0.s8 %v2101
    %v2103 = vlaneseq
    %v2104 = vshrl.u32 %v2103, 7
    %v2105 = vsub.s32 %v2102, %v2104
    %v2106 = vrot.slane %v2092, %v2105
    %v2107 = vcombine.high %v2099, %v2099
    %2108 = vrot.lane.b32.xlu0 %v2099, 117
    %v2109 = vpop.permute.xlu0 %2108
    %2110 = vrot.lane.b32.xlu0 %v2107, 117
    %v2111 = vpop.permute.xlu0 %2110
    %2112 = vrot.lane.b32.xlu0 %v2106, 117
    %v2113 = vpop.permute.xlu0 %2112
    %vm2114 = vcmask 957440
    %v2115 = vsel %vm2114, %v2109, %v2111
    %v2116 = vsel %vm2114, %v2111, %v2113
    %2119 = vmatprep.subr.mxu0 0.0
    %2120 = vmatpush1.msra.mxu0 %v883
    %2121 = vmatprep.subr.mxu0 0.0
    %2122 = vmatpush1.msra.mxu0 %v882
    %2123 = vmatprep.subr.mxu0 0.0
    %2124 = vmatpush1.msra.mxu0 %v881
    %2125 = vmatprep.subr.mxu0 0.0
    %2126 = vmatpush1.msra.mxu0 %v880
    %2127 = vmatprep.subr.mxu0 0.0
    %2128 = vmatpush1.msra.mxu0 %v879
    %2129 = vmatprep.subr.mxu0 0.0
    %2130 = vmatpush1.msra.mxu0 %v878
    %2131 = vmatprep.subr.mxu0 0.0
    %2132 = vmatpush1.msra.mxu0 %v877
    %2133 = vmatprep.subr.mxu0 0.0
    %2134 = vmatpush1.msra.mxu0 %v876
    %2135 = vmatprep.subr.mxu0 0.0
    %2136 = vmatpush1.msra.mxu0 %v875
    %2137 = vmatprep.subr.mxu0 0.0
    %2138 = vmatpush1.msra.mxu0 %v874
    %2139 = vmatprep.subr.mxu0 0.0
    %2140 = vmatpush1.msra.mxu0 %v873
    %2141 = vmatprep.subr.mxu0 0.0
    %2142 = vmatpush1.msra.mxu0 %v872
    %2143 = vmatprep.subr.mxu0 0.0
    %2144 = vmatpush1.msra.mxu0 %v871
    %2145 = vmatprep.subr.mxu0 0.0
    %2146 = vmatpush1.msra.mxu0 %v870
    %2147 = vmatprep.subr.mxu0 0.0
    %2148 = vmatpush1.msra.mxu0 %v869
    %2149 = vmatprep.subr.mxu0 0.0
    %2150 = vmatpush1.msra.mxu0 %v868
    %2151 = vmatprep.subr.mxu0 0.0
    %2152 = vmatpush2.msra.mxu0 %v899
    %2153 = vmatprep.subr.mxu0 0.0
    %2154 = vmatpush2.msra.mxu0 %v898
    %2155 = vmatprep.subr.mxu0 0.0
    %2156 = vmatpush2.msra.mxu0 %v897
    %2157 = vmatprep.subr.mxu0 0.0
    %2158 = vmatpush2.msra.mxu0 %v896
    %2159 = vmatprep.subr.mxu0 0.0
    %2160 = vmatpush2.msra.mxu0 %v895
    %2161 = vmatprep.subr.mxu0 0.0
    %2162 = vmatpush2.msra.mxu0 %v894
    %2163 = vmatprep.subr.mxu0 0.0
    %2164 = vmatpush2.msra.mxu0 %v893
    %2165 = vmatprep.subr.mxu0 0.0
    %2166 = vmatpush2.msra.mxu0 %v892
    %2167 = vmatprep.subr.mxu0 0.0
    %2168 = vmatpush2.msra.mxu0 %v891
    %2169 = vmatprep.subr.mxu0 0.0
    %2170 = vmatpush2.msra.mxu0 %v890
    %2171 = vmatprep.subr.mxu0 0.0
    %2172 = vmatpush2.msra.mxu0 %v889
    %2173 = vmatprep.subr.mxu0 0.0
    %2174 = vmatpush2.msra.mxu0 %v888
    %2175 = vmatprep.subr.mxu0 0.0
    %2176 = vmatpush2.msra.mxu0 %v887
    %2177 = vmatprep.subr.mxu0 0.0
    %2178 = vmatpush2.msra.mxu0 %v886
    %2179 = vmatprep.subr.mxu0 0.0
    %2180 = vmatpush2.msra.mxu0 %v885
    %2181 = vmatprep.subr.mxu0 0.0
    %2182 = vmatpush2.msra.mxu0 %v884
    %2183 = vmatprep.mubr.f32.mxu0 %v2116
    %2184 = vmatmul.mubr.f32.gmra.mxu0 %v2115
    %v2185 = vpop.f32.mrf.mxu0
    %v2186 = vadd.f32 %v907, %v2185
    %v2187 = vpop.f32.mrf.mxu0
    %2188 = vdwg.mxu0
    %v2189 = vmax.f32 %v2186, 0.0
    %vm2190 = vcmp.gt.s32.totalorder %v901, 11
    %v2191 = vsel %vm2190, 1, 0
    %v2192 = vlaneseq
    %v2193 = vshrl.u32 %v2192, 7
    %v2194 = vsub.s32 0, %v2193
    %v2195 = vrot.slane %v2191, %v2194
    %vm2196 = vcmp.eq.s32.totalorder %v2195, 1
    %v2197 = vsel %vm2196, %v2189, 0.0
    %v2198 = vmax.f32 %v2089, %v2197
    %v2199 = vld [vmem:[%s5] sm:$0xff]
    %v2200 = vld [vmem:[%s5 + $0x8] sm:$0xff]
    %v2201 = vld [vmem:[%s5 + $0x10] sm:$0xff]
    %v2202 = vld [vmem:[%s5 + $0x18] sm:$0xff]
    %v2203 = vld [vmem:[%s5 + $0x20] sm:$0xff]
    %v2204 = vld [vmem:[%s5 + $0x28] sm:$0xff]
    %v2205 = vld [vmem:[%s5 + $0x30] sm:$0xff]
    %v2206 = vld [vmem:[%s5 + $0x38] sm:$0xff]
    %v2207 = vld [vmem:[%s5 + $0x40] sm:$0xff]
    %v2208 = vld [vmem:[%s5 + $0x48] sm:$0xff]
    %v2209 = vld [vmem:[%s5 + $0x50] sm:$0xff]
    %v2210 = vld [vmem:[%s5 + $0x58] sm:$0xff]
    %v2211 = vld [vmem:[%s5 + $0x60] sm:$0xff]
    %v2212 = vld [vmem:[%s5 + $0x68] sm:$0xff]
    %v2213 = vld [vmem:[%s5 + $0x70] sm:$0xff]
    %v2214 = vld [vmem:[%s5 + $0x78] sm:$0xff]
    %v2215 = vld [vmem:[%s6] sm:$0x1]
    %v2217 = vlaneseq
    %v2218 = vshrl.u32 %v2217, 7
    %v2219 = vsub.s32 0, %v2218
    %v2220 = vrot.slane %v2215, %v2219
    %2222 = vmatprep.subr.mxu0 0.0
    %2223 = vmatpush1.msra.mxu0 %v2214
    %2224 = vmatprep.subr.mxu0 0.0
    %2225 = vmatpush1.msra.mxu0 %v2213
    %2226 = vmatprep.subr.mxu0 0.0
    %2227 = vmatpush1.msra.mxu0 %v2212
    %2228 = vmatprep.subr.mxu0 0.0
    %2229 = vmatpush1.msra.mxu0 %v2211
    %2230 = vmatprep.subr.mxu0 0.0
    %2231 = vmatpush1.msra.mxu0 %v2210
    %2232 = vmatprep.subr.mxu0 0.0
    %2233 = vmatpush1.msra.mxu0 %v2209
    %2234 = vmatprep.subr.mxu0 0.0
    %2235 = vmatpush1.msra.mxu0 %v2208
    %2236 = vmatprep.subr.mxu0 0.0
    %2237 = vmatpush1.msra.mxu0 %v2207
    %2238 = vmatprep.subr.mxu0 0.0
    %2239 = vmatpush1.msra.mxu0 %v2206
    %2240 = vmatprep.subr.mxu0 0.0
    %2241 = vmatpush1.msra.mxu0 %v2205
    %2242 = vmatprep.subr.mxu0 0.0
    %2243 = vmatpush1.msra.mxu0 %v2204
    %2244 = vmatprep.subr.mxu0 0.0
    %2245 = vmatpush1.msra.mxu0 %v2203
    %2246 = vmatprep.subr.mxu0 0.0
    %2247 = vmatpush1.msra.mxu0 %v2202
    %2248 = vmatprep.subr.mxu0 0.0
    %2249 = vmatpush1.msra.mxu0 %v2201
    %2250 = vmatprep.subr.mxu0 0.0
    %2251 = vmatpush1.msra.mxu0 %v2200
    %2252 = vmatprep.subr.mxu0 0.0
    %2253 = vmatpush1.msra.mxu0 %v2199
    %2254 = vmatprep.subr.mxu0 0.0
    %2255 = vmatpush2.msra.mxu0 0.0
    %2256 = vmatprep.subr.mxu0 0.0
    %2257 = vmatpush2.msra.mxu0 0.0
    %2258 = vmatprep.subr.mxu0 0.0
    %2259 = vmatpush2.msra.mxu0 0.0
    %2260 = vmatprep.subr.mxu0 0.0
    %2261 = vmatpush2.msra.mxu0 0.0
    %2262 = vmatprep.subr.mxu0 0.0
    %2263 = vmatpush2.msra.mxu0 0.0
    %2264 = vmatprep.subr.mxu0 0.0
    %2265 = vmatpush2.msra.mxu0 0.0
    %2266 = vmatprep.subr.mxu0 0.0
    %2267 = vmatpush2.msra.mxu0 0.0
    %2268 = vmatprep.subr.mxu0 0.0
    %2269 = vmatpush2.msra.mxu0 0.0
    %2270 = vmatprep.subr.mxu0 0.0
    %2271 = vmatpush2.msra.mxu0 0.0
    %2272 = vmatprep.subr.mxu0 0.0
    %2273 = vmatpush2.msra.mxu0 0.0
    %2274 = vmatprep.subr.mxu0 0.0
    %2275 = vmatpush2.msra.mxu0 0.0
    %2276 = vmatprep.subr.mxu0 0.0
    %2277 = vmatpush2.msra.mxu0 0.0
    %2278 = vmatprep.subr.mxu0 0.0
    %2279 = vmatpush2.msra.mxu0 0.0
    %2280 = vmatprep.subr.mxu0 0.0
    %2281 = vmatpush2.msra.mxu0 0.0
    %2282 = vmatprep.subr.mxu0 0.0
    %2283 = vmatpush2.msra.mxu0 0.0
    %2284 = vmatprep.subr.mxu0 0.0
    %2285 = vmatpush2.msra.mxu0 0.0
    %2286 = vmatprep.mubr.f32.mxu0 0.0
    %2287 = vmatmul.mubr.f32.gmra.mxu0 %v2198
    %v2288 = vpop.f32.mrf.mxu0
    %v2289 = vadd.f32 %v2220, %v2288
    %v2290 = vpop.f32.mrf.mxu0
    %2291 = vdwg.mxu0
    %v2292 = vld [vmem:[#allocation7] sm:$0xff]
    %v2293 = vld [vmem:[#allocation7 + $0x8] sm:$0xff]
    %v2294 = vld [vmem:[#allocation7 + $0x10] sm:$0xff]
    %v2295 = vld [vmem:[#allocation7 + $0x18] sm:$0xff]
    %v2296 = vld [vmem:[#allocation7 + $0x20] sm:$0xff]
    %v2297 = vld [vmem:[#allocation7 + $0x28] sm:$0xff]
    %v2298 = vld [vmem:[#allocation7 + $0x30] sm:$0xff]
    %v2299 = vld [vmem:[#allocation7 + $0x38] sm:$0xff]
    %v2300 = vld [vmem:[#allocation7 + $0x40] sm:$0xff]
    %v2301 = vld [vmem:[#allocation7 + $0x48] sm:$0xff]
    %v2302 = vld [vmem:[#allocation7 + $0x50] sm:$0xff]
    %v2303 = vld [vmem:[#allocation7 + $0x58] sm:$0xff]
    %v2304 = vld [vmem:[#allocation7 + $0x60] sm:$0xff]
    %v2305 = vld [vmem:[#allocation7 + $0x68] sm:$0xff]
    %v2306 = vld [vmem:[#allocation7 + $0x70] sm:$0xff]
    %v2307 = vld [vmem:[#allocation7 + $0x78] sm:$0xff]
    %v2308 = vld [vmem:[%s8] sm:$0x1]
    %v2310 = vlaneseq
    %v2311 = vshrl.u32 %v2310, 7
    %v2312 = vsub.s32 0, %v2311
    %v2313 = vrot.slane %v2308, %v2312
    %2315 = vmatprep.subr.mxu0 0.0
    %2316 = vmatpush1.msra.mxu0 %v2307
    %2317 = vmatprep.subr.mxu0 0.0
    %2318 = vmatpush1.msra.mxu0 %v2306
    %2319 = vmatprep.subr.mxu0 0.0
    %2320 = vmatpush1.msra.mxu0 %v2305
    %2321 = vmatprep.subr.mxu0 0.0
    %2322 = vmatpush1.msra.mxu0 %v2304
    %2323 = vmatprep.subr.mxu0 0.0
    %2324 = vmatpush1.msra.mxu0 %v2303
    %2325 = vmatprep.subr.mxu0 0.0
    %2326 = vmatpush1.msra.mxu0 %v2302
    %2327 = vmatprep.subr.mxu0 0.0
    %2328 = vmatpush1.msra.mxu0 %v2301
    %2329 = vmatprep.subr.mxu0 0.0
    %2330 = vmatpush1.msra.mxu0 %v2300
    %2331 = vmatprep.subr.mxu0 0.0
    %2332 = vmatpush1.msra.mxu0 %v2299
    %2333 = vmatprep.subr.mxu0 0.0
    %2334 = vmatpush1.msra.mxu0 %v2298
    %2335 = vmatprep.subr.mxu0 0.0
    %2336 = vmatpush1.msra.mxu0 %v2297
    %2337 = vmatprep.subr.mxu0 0.0
    %2338 = vmatpush1.msra.mxu0 %v2296
    %2339 = vmatprep.subr.mxu0 0.0
    %2340 = vmatpush1.msra.mxu0 %v2295
    %2341 = vmatprep.subr.mxu0 0.0
    %2342 = vmatpush1.msra.mxu0 %v2294
    %2343 = vmatprep.subr.mxu0 0.0
    %2344 = vmatpush1.msra.mxu0 %v2293
    %2345 = vmatprep.subr.mxu0 0.0
    %2346 = vmatpush1.msra.mxu0 %v2292
    %2347 = vmatprep.subr.mxu0 0.0
    %2348 = vmatpush2.msra.mxu0 0.0
    %2349 = vmatprep.subr.mxu0 0.0
    %2350 = vmatpush2.msra.mxu0 0.0
    %2351 = vmatprep.subr.mxu0 0.0
    %2352 = vmatpush2.msra.mxu0 0.0
    %2353 = vmatprep.subr.mxu0 0.0
    %2354 = vmatpush2.msra.mxu0 0.0
    %2355 = vmatprep.subr.mxu0 0.0
    %2356 = vmatpush2.msra.mxu0 0.0
    %2357 = vmatprep.subr.mxu0 0.0
    %2358 = vmatpush2.msra.mxu0 0.0
    %2359 = vmatprep.subr.mxu0 0.0
    %2360 = vmatpush2.msra.mxu0 0.0
    %2361 = vmatprep.subr.mxu0 0.0
    %2362 = vmatpush2.msra.mxu0 0.0
    %2363 = vmatprep.subr.mxu0 0.0
    %2364 = vmatpush2.msra.mxu0 0.0
    %2365 = vmatprep.subr.mxu0 0.0
    %2366 = vmatpush2.msra.mxu0 0.0
    %2367 = vmatprep.subr.mxu0 0.0
    %2368 = vmatpush2.msra.mxu0 0.0
    %2369 = vmatprep.subr.mxu0 0.0
    %2370 = vmatpush2.msra.mxu0 0.0
    %2371 = vmatprep.subr.mxu0 0.0
    %2372 = vmatpush2.msra.mxu0 0.0
    %2373 = vmatprep.subr.mxu0 0.0
    %2374 = vmatpush2.msra.mxu0 0.0
    %2375 = vmatprep.subr.mxu0 0.0
    %2376 = vmatpush2.msra.mxu0 0.0
    %2377 = vmatprep.subr.mxu0 0.0
    %2378 = vmatpush2.msra.mxu0 0.0
    %2379 = vmatprep.mubr.f32.mxu0 0.0
    %2380 = vmatmul.mubr.f32.gmra.mxu0 %v2289
    %v2381 = vpop.f32.mrf.mxu0
    %v2382 = vadd.f32 %v2313, %v2381
    %v2383 = vpop.f32.mrf.mxu0
    %2384 = vdwg.mxu0
    %v2385 = vlaneseq
    %v2386 = vand.u32 %v2385, 127
    %vm2387 = vcmp.lt.s32.totalorder %v2386, 3
    %v2388 = vsel %vm2387, %v2382, -1e+30
    %vm2389 = vcmask 1041408
    %v2390 = vsel %vm2389, %v2388, -inf
    %2391 = vmax.xlane.f32.xlu0 %v2390
    %v2392 = vpop.xlane.xlu0 %2391
    %v2393 = vsub.f32 %v2388, %v2392
    %v2394 = vmul.f32 %v2393, 1.442695
    %v2395 = vpow.pop %v2394
    %v2396 = vsel %vm2389, %v2395, 0.0
    %2397 = vadd.xlane.f32.xlu0 %v2396
    %v2398 = vpop.xlane.xlu0 %2397
    %v2399 = vlog2.pop %v2398
    %v2400 = vmul.f32 %v2399, 0.6931472
    %v2401 = vadd.f32 %v2400, %v2392
    %v2402 = vsub.f32 %v2388, %v2401
    %2403 = vst [vmem:[%s9] sm:$0x3] %v2402
    // Predicated region
    $region50: #{cnn_forward.1} parent=1 // pred_check
      _
    $region51: #{cnn_forward.1} parent=1 // pred_check_branch
      %2405 = sbr.rel (0) target = $region53
    $region52: #{cnn_forward.1} parent=1 // pred_region
      _
    $region53: #{cnn_forward.1} parent=1 // pred_fallthru
      _
    // Predicated region
    $region54: #{cnn_forward.1} parent=1 // pred_check
      _
    $region55: #{cnn_forward.1} parent=1 // pred_check_branch
      %2407 = sbr.rel (0) target = $region57
    $region56: #{cnn_forward.1} parent=1 // pred_region
      _
    $region57: #{cnn_forward.1} parent=1 // pred_fallthru
      _
    %2408 = vsyncpa [#allocation4], 1
    %2409 = vsyncpa [#allocation6], 1

</llo_original>
